<compile_context>
chip_gen: v7x
topology: tpu7x:2x2x1
jax: 0.10.0
libtpu: 0.0.40
codegen_flags: <defaults>
</compile_context>

<pallas_src>
import math
import numpy as np

import jax
import jax.numpy as jnp
from jax.experimental import pallas as pl
from jax.experimental.pallas import tpu as pltpu

MAX_K = 32        # max_k
TOPK_WP = 8       # topk_wp
MIDSIZE = 32      # midsize (distance_fc2 hidden)
MIDSIZE_DC = 4    # midsize_dc (distance_fc1 hidden units per neighbour)

# ---- lane-dense input slab X layout (width 128) --------------------------------
IN_W = 128
D_OFF = 0                         # knn_dists            lanes [0, 32)
LK_OFF = MAX_K                    # log knn_key_feature  lanes [32, 64)
LP_OFF = 2 * MAX_K                # log select_probs     lanes [64, 96)
TP_OFF = 3 * MAX_K                # log top-k net probs  lanes [96, 104)
ONE_COL = IN_W - 1                # constant 1.0 (carries all biases through W_big)

# ---- fused weight W_big (IN_W x BIG_W) column layout ----------------------------
H1 = MIDSIZE_DC * MAX_K           # 128: distance_fc1 hidden width (4 units x 32 nb)
SIM_COL = H1 + MIDSIZE            # 160
BIG_W = H1 + MIDSIZE + 1          # 161: [fc1 hidden | fc2 hidden (dists part) | sim]

# ---- auxiliary weight W_aux (AUX_R x 32) row layout ------------------------------
LC_OFF = H1                       # rows [128,160): tri-folded label-count weights
NBIAS_ROW = H1 + MAX_K            # row 160: noise bias (fc1_b2 replicated over K)
W2_OFF = 168                      # rows [168,200): f2_w2.T (distance_fc2 layer 2)
LBIAS_ROW = 200                   # row 200: [0, f2_b2[1]] (a-bias folded into sim)
AUX_R = 208
AUX_C = MAX_K                     # 32

OUT_W = 128                       # packed output slab width


# --------------------------------------------------------------------------
# kernel
# --------------------------------------------------------------------------
def meta_k_kernel(x_ref, tgt_ref, wbig_ref, waux_ref, out_ref):
    K = MAX_K
    x = x_ref[...]                                # (T, 128) f32 consolidated inputs
    tgt = tgt_ref[...]                            # (T, K)  int32 retrieved token ids
    T = x.shape[0]

    d = x[:, D_OFF:D_OFF + K]                     # (T, K) knn distances

    # ---- label counts: first-occurrence indicator via K-1 shifted column
    #      compares (no (T, K, K) intermediate).  The prefix-sum ("cumsum") is
    #      folded into the label-count weights in the wrapper.
    lane = jax.lax.broadcasted_iota(jnp.int32, (1, K), 1)
    dup = jnp.zeros((T, K), jnp.int32)
    for j in range(K - 1):                        # static, fully unrolled
        eqj = (tgt == tgt[:, j:j + 1]).astype(jnp.int32)      # (T, K)
        mj = (lane > j).astype(jnp.int32)                     # (1, K)
        dup = dup + eqj * mj
    is_new = jnp.where((dup == 0) & (tgt != 0), 1.0, 0.0)     # (T, K) f32

    # ---- one fused 128-wide MXU matmul (biases via the ones column of X):
    #   cols [0:128)   distance_fc1 hidden pre-activation (unit j, neighbour k)
    #   cols [128:160) distance_fc2 hidden pre-activation from knn_dists
    #   col  [160]     distance_func output "sim" (bias holds df_b - f2_b2[0])
    big = jnp.dot(x, wbig_ref[...], preferred_element_type=jnp.float32)   # (T, 161)

    lc_h = jnp.dot(is_new, waux_ref[LC_OFF:LC_OFF + K, :],
                   preferred_element_type=jnp.float32)                    # (T, MID)
    h1 = jnp.tanh(big[:, 0:H1])                                           # (T, 128)
    h2 = jnp.tanh(big[:, H1:H1 + MIDSIZE] + lc_h)                         # (T, MID)
    sim = big[:, SIM_COL:SIM_COL + 1]                                     # (T, 1)

    # distance_fc1 layer 2 (block-diagonal) + bias row -> noise_logit
    noise = (jnp.dot(h1, waux_ref[0:H1, :], preferred_element_type=jnp.float32)
             + waux_ref[NBIAS_ROW:NBIAS_ROW + 1, :])                      # (T, K)

    # distance_fc2 layer 2 -> [a (no bias), temperature logit]
    lam = (jnp.dot(h2, waux_ref[W2_OFF:W2_OFF + MIDSIZE, 0:2],
                   preferred_element_type=jnp.float32)
           + waux_ref[LBIAS_ROW:LBIAS_ROW + 1, 0:2])                      # (T, 2)

    # softmax([a + f2_b2[0], sim_true])[:, :1] == sigmoid(a - sim)  (bias folded)
    knn_lambda = jax.nn.sigmoid(lam[:, 0:1] - sim)                        # (T, 1)
    tempe = jax.nn.sigmoid(lam[:, 1:2])                                   # (T, 1)

    # ---- final kNN softmax over the K retrieved neighbours (exact divide)
    logits = noise - d * tempe
    m = jnp.max(logits, axis=-1, keepdims=True)
    e = jnp.exp(logits - m)
    probs = e / jnp.sum(e, axis=-1, keepdims=True)                        # (T, K)

    # ---- packed lane-dense output slab: direct slice stores (no concat temp)
    out_ref[:, 0:K] = probs
    out_ref[:, K:2 * K] = noise
    out_ref[:, 2 * K:2 * K + 1] = tempe
    out_ref[:, 2 * K + 1:2 * K + 2] = knn_lambda
    out_ref[:, 2 * K + 2:] = jnp.zeros((T, OUT_W - 2 * K - 2), jnp.float32)


# --------------------------------------------------------------------------
# wrapper-side weight preparation (fusion / folding)
# --------------------------------------------------------------------------
def prepare_kernel_params(raw):
    K, TK, MID, MDC = MAX_K, TOPK_WP, MIDSIZE, MIDSIZE_DC

    df_w, df_b = raw['df_w'], raw['df_b']          # (1, 2K+TK), (1,)
    f2_w1, f2_b1 = raw['f2_w1'], raw['f2_b1']      # (MID, 2K), (MID,)
    f2_w2, f2_b2 = raw['f2_w2'], raw['f2_b2']      # (2, MID), (2,)
    fc1_w1, fc1_b1 = raw['fc1_w1'], raw['fc1_b1']  # (MDC, 2), (MDC,)
    fc1_w2, fc1_b2 = raw['fc1_w2'], raw['fc1_b2']  # (1, MDC), (1,)

    kk = jnp.arange(K)

    # ---- W_big: one (128, 161) matmul weight; biases live in the ones row -------
    w_big = jnp.zeros((IN_W, BIG_W), jnp.float32)
    # distance_fc1 layer 1 (per neighbour): lk/lp -> hidden unit j of neighbour k
    for j in range(MDC):
        cols = j * K + kk
        w_big = w_big.at[LK_OFF + kk, cols].set(fc1_w1[j, 0])
        w_big = w_big.at[LP_OFF + kk, cols].set(fc1_w1[j, 1])
        w_big = w_big.at[ONE_COL, cols].set(fc1_b1[j])
    # distance_fc2 layer 1, knn_dists half (label-count half lives in W_aux)
    w_big = w_big.at[D_OFF:D_OFF + K, H1:H1 + MID].set(f2_w1[:, :K].T)
    w_big = w_big.at[ONE_COL, H1:H1 + MID].set(f2_b1)
    # distance_func (sim): torch input order is [log top_prob | log kf | log sp]
    w_big = w_big.at[TP_OFF + jnp.arange(TK), SIM_COL].set(df_w[0, :TK])
    w_big = w_big.at[LK_OFF + kk, SIM_COL].set(df_w[0, TK:TK + K])
    w_big = w_big.at[LP_OFF + kk, SIM_COL].set(df_w[0, TK + K:TK + 2 * K])
    # fold f2_b2[0] into sim's bias: softmax([a+b0, sim+db]) == sigmoid(a - (sim+db-b0))
    w_big = w_big.at[ONE_COL, SIM_COL].set(df_b[0] - f2_b2[0])

    # ---- W_aux: all remaining small weights in one (208, 32) array ---------------
    w_aux = jnp.zeros((AUX_R, AUX_C), jnp.float32)
    # distance_fc1 layer 2: block-diagonal (hidden unit j of neighbour k -> noise[k])
    for j in range(MDC):
        w_aux = w_aux.at[j * K + kk, kk].set(fc1_w2[0, j])
    # label-count half of distance_fc2 layer 1, prefix-sum folded: lc = cumsum(is_new)
    tri = jnp.triu(jnp.ones((K, K), jnp.float32))           # tri[r, c] = 1 iff r <= c
    w_aux = w_aux.at[LC_OFF:LC_OFF + K, :].set(tri @ f2_w1[:, K:].T)
    # biases and distance_fc2 layer 2
    w_aux = w_aux.at[NBIAS_ROW, :].set(fc1_b2[0])
    w_aux = w_aux.at[W2_OFF:W2_OFF + MID, 0:2].set(f2_w2.T)
    w_aux = w_aux.at[LBIAS_ROW, 1].set(f2_b2[1])

    return {'w_big': w_big, 'w_aux': w_aux}


# --------------------------------------------------------------------------
# forward wrapper
# --------------------------------------------------------------------------
def meta_k_forward(tgt_index, knn_dists, knn_key_feature, network_probs,
                   network_select_probs, raw_params, tile=1024):
    B, S, K = knn_dists.shape
    assert K == MAX_K and 2 * K + 2 <= OUT_W
    V = network_probs.shape[-1]
    N = B * S

    P = prepare_kernel_params(raw_params)

    d = knn_dists.reshape(N, K).astype(jnp.float32)
    # NOTE: like the torch original, logs assume strictly positive probabilities.
    lk = jnp.log(knn_key_feature.reshape(N, K).astype(jnp.float32))
    lp = jnp.log(network_select_probs.reshape(N, K).astype(jnp.float32))
    # top-k over the vocab stays in the wrapper: the (N, V) stream never enters
    # the kernel, and the logs ride the same wrapper pass.
    tp = jnp.log(jax.lax.top_k(
        network_probs.reshape(N, V).astype(jnp.float32), TOPK_WP)[0])

    # one lane-dense (N, 128) input slab; trailing ones column carries the biases
    x = jnp.concatenate(
        [d, lk, lp, tp,
         jnp.zeros((N, ONE_COL - (3 * K + TOPK_WP)), jnp.float32),
         jnp.ones((N, 1), jnp.float32)], axis=-1)
    tgt = tgt_index.reshape(N, K).astype(jnp.int32)

    # row tile: large to amortise per-grid-step overhead, but keep >= 2 grid steps
    # so dimension_semantics=("parallel",) can split rows across v7x's 2 TensorCores.
    tile = max(8, (min(tile, 2048) // 8) * 8)
    if N > 8:
        tile = min(tile, ((N + 1) // 2 + 7) // 8 * 8)
    tile = min(tile, ((N + 7) // 8) * 8)
    n_blocks = pl.cdiv(N, tile)
    Np = n_blocks * tile
    if Np != N:
        # zero rows (including the ones column) stay finite through the kernel
        x = jnp.pad(x, ((0, Np - N), (0, 0)))
        tgt = jnp.pad(tgt, ((0, Np - N), (0, 0)))

    slab = pl.pallas_call(
        meta_k_kernel,
        out_shape=jax.ShapeDtypeStruct((Np, OUT_W), jnp.float32),
        grid=(n_blocks,),
        in_specs=[
            pl.BlockSpec((tile, IN_W), lambda i: (i, 0)),        # X
            pl.BlockSpec((tile, MAX_K), lambda i: (i, 0)),       # tgt ids
            pl.BlockSpec(P['w_big'].shape, lambda i: (0, 0)),    # fused weights
            pl.BlockSpec(P['w_aux'].shape, lambda i: (0, 0)),    # small weights/biases
        ],
        out_specs=pl.BlockSpec((tile, OUT_W), lambda i: (i, 0)),
        compiler_params=pltpu.CompilerParams(
            dimension_semantics=("parallel",),
            vmem_limit_bytes=32 * 1024 * 1024),
    )(x, tgt, P['w_big'], P['w_aux'])

    slab = slab[:N]
    return {'probs': slab[:, :K].reshape(B, S, K),
            'noise_logit': slab[:, K:2 * K].reshape(B, S, K),
            'tempe': slab[:, 2 * K:2 * K + 1].reshape(B, S, 1),
            'knn_lambda': slab[:, 2 * K + 1:2 * K + 2].reshape(B, S, 1)}


# --------------------------------------------------------------------------
# deterministic parameter init (torch nn.Linear layout)
# --------------------------------------------------------------------------
def init_params(key):
    ks = jax.random.split(key, 10)

    def lin(kw, kb, out_f, in_f):
        bound = 1.0 / math.sqrt(in_f)
        w = jax.random.uniform(kw, (out_f, in_f), jnp.float32, -bound, bound)
        b = jax.random.uniform(kb, (out_f,), jnp.float32, -bound, bound)
        return w, b

    df_w, df_b = lin(ks[0], ks[1], 1, 2 * MAX_K + TOPK_WP)          # distance_func
    fc1_w1, fc1_b1 = lin(ks[2], ks[3], MIDSIZE_DC, 2)               # distance_fc1[0]
    fc1_w2, fc1_b2 = lin(ks[4], ks[5], 1, MIDSIZE_DC)               # distance_fc1[2]
    f2_w1, f2_b1 = lin(ks[6], ks[7], MIDSIZE, 2 * MAX_K)            # distance_fc2[0]
    f2_w2, f2_b2 = lin(ks[8], ks[9], 2, MIDSIZE)                    # distance_fc2[2]

    return dict(df_w=df_w, df_b=df_b,
                fc1_w1=fc1_w1, fc1_b1=fc1_b1, fc1_w2=fc1_w2, fc1_b2=fc1_b2,
                f2_w1=f2_w1, f2_b1=f2_b1, f2_w2=f2_w2, f2_b2=f2_b2)


# --------------------------------------------------------------------------
# float64 numpy reference (literal translation of the torch forward)
# --------------------------------------------------------------------------
def _label_count_np(vals):
    B, S, K = vals.shape
    out = np.zeros((B, S, K), np.float64)
    for b in range(B):
        for s in range(S):
            seen, cnt = set(), 0
            for i in range(K):
                v = int(vals[b, s, i])
                if v != 0 and v not in seen:
                    seen.add(v)
                    cnt += 1
                out[b, s, i] = cnt
    return out


def _np_sigmoid(x):
    return 1.0 / (1.0 + np.exp(-x))


def _np_softmax(x):
    m = x.max(-1, keepdims=True)
    e = np.exp(x - m)
    return e / e.sum(-1, keepdims=True)


def ref_forward(tgt, dists, keyf, nprobs, selp, raw):
    P = {k: np.asarray(v, np.float64) for k, v in raw.items()}
    d = np.asarray(dists, np.float64)
    lk = np.log(np.asarray(keyf, np.float64))
    lp = np.log(np.asarray(selp, np.float64))
    tp = -np.sort(-np.asarray(nprobs, np.float64), axis=-1)[..., :TOPK_WP]
    tpl = np.log(tp)
    lc = _label_count_np(np.asarray(tgt))

    akf = np.stack([lk, lp], axis=-1)                               # (B,S,K,2)
    h = np.tanh(akf @ P['fc1_w1'].T + P['fc1_b1'])
    noise = (h @ P['fc1_w2'].T)[..., 0] + P['fc1_b2'][0]            # (B,S,K)
    feat = np.concatenate([tpl, lk, lp], axis=-1)                   # (B,S,2K+TK)
    sim = feat @ P['df_w'][0] + P['df_b'][0]                        # (B,S)
    knn_feat = np.concatenate([d, lc], axis=-1)                     # (B,S,2K)
    h2 = np.tanh(knn_feat @ P['f2_w1'].T + P['f2_b1'])
    lamlog = h2 @ P['f2_w2'].T + P['f2_b2']                         # (B,S,2)
    lam2 = np.stack([lamlog[..., 0], sim], axis=-1)
    knn_lambda = _np_softmax(lam2)[..., :1]                         # (B,S,1)
    tempe = _np_sigmoid(lamlog[..., 1:2])                           # (B,S,1)
    probs = _np_softmax(-d * tempe + noise)                         # (B,S,K)
    return {'probs': probs, 'tempe': tempe,
            'noise_logit': noise, 'knn_lambda': knn_lambda}


# --------------------------------------------------------------------------
if __name__ == "__main__":
    def run_case(seed, B, S, V, tile):
        key = jax.random.PRNGKey(seed)
        ks = jax.random.split(key, 6)
        K = MAX_K
        tgt_index = jax.random.randint(ks[0], (B, S, K), 0, 40)
        knn_dists = jax.random.uniform(ks[1], (B, S, K), jnp.float32, 0.5, 10.0)
        knn_key_feature = jax.random.uniform(ks[2], (B, S, K), jnp.float32, 1e-3, 1.0)
        network_probs = jax.nn.softmax(jax.random.normal(ks[3], (B, S, V)), axis=-1)
        network_select_probs = jax.random.uniform(ks[4], (B, S, K), jnp.float32,
                                                  1e-3, 1.0)
        params = init_params(ks[5])

        out = meta_k_forward(tgt_index, knn_dists, knn_key_feature,
                             network_probs, network_select_probs, params, tile=tile)
        out = jax.block_until_ready(out)

        ref = ref_forward(tgt_index, knn_dists, knn_key_feature,
                          network_probs, network_select_probs, params)

        for name in ('probs', 'tempe', 'noise_logit', 'knn_lambda'):
            a = np.asarray(out[name], np.float64)
            b = np.asarray(ref[name]).reshape(a.shape)
            assert np.all(np.isfinite(a)), name
            assert np.allclose(a, b, atol=2e-2, rtol=2e-2), (name, float(np.abs(a - b).max()))

    # small canonical case: N=16 rows -> tile=8, grid=2 (both TCs exercised)
    run_case(seed=0, B=2, S=8, V=128, tile=1024)
    # ragged case: N=75 -> tile=40, Np=80, grid=2 (row padding path exercised)
    run_case(seed=1, B=3, S=25, V=512, tile=1024)

    print("KERNEL_OK")
</pallas_src>

<mosaic_0001>
module attributes {stable_mosaic.version = 11 : i64} {
  func.func @meta_k_kernel(%arg0: i32, %arg1: memref<8x128xf32, #tpu.memory_space<vmem>>, %arg2: memref<8x32xi32, #tpu.memory_space<vmem>>, %arg3: memref<128x161xf32, #tpu.memory_space<vmem>>, %arg4: memref<208x32xf32, #tpu.memory_space<vmem>>, %arg5: memref<8x128xf32, #tpu.memory_space<vmem>>) attributes {dimension_semantics = [#tpu.dimension_semantics<parallel>], iteration_bounds = array<i64: 2>, scalar_prefetch = 0 : i64, scratch_operands = 0 : i64, tpu.core_type = #tpu.core_type<tc>, window_params = [{transform_indices = @transform_0, window_bounds = array<i64: 8, 128>}, {transform_indices = @transform_1, window_bounds = array<i64: 8, 32>}, {pipeline_mode = #tpu.pipeline_mode<synchronous>, transform_indices = @transform_2, window_bounds = array<i64: 128, 161>}, {pipeline_mode = #tpu.pipeline_mode<synchronous>, transform_indices = @transform_3, window_bounds = array<i64: 208, 32>}, {transform_indices = @transform_4, window_bounds = array<i64: 8, 128>}]} {
    %c0 = arith.constant 0 : index
    %c0_0 = arith.constant 0 : index
    %0 = vector.load %arg1[%c0, %c0_0] : memref<8x128xf32, #tpu.memory_space<vmem>>, vector<8x128xf32>
    %c0_1 = arith.constant 0 : index
    %c0_2 = arith.constant 0 : index
    %1 = vector.load %arg2[%c0_1, %c0_2] : memref<8x32xi32, #tpu.memory_space<vmem>>, vector<8x32xi32>
    %2 = vector.extract_strided_slice %0 {offsets = [0, 0], sizes = [8, 32], strides = [1, 1]} : vector<8x128xf32> to vector<8x32xf32>
    %3 = tpu.iota {dimensions = array<i32: 1>} : vector<1x32xi32>
    %c0_i32 = arith.constant 0 : i32
    %4 = vector.broadcast %c0_i32 : i32 to vector<8x32xi32>
    %5 = vector.extract_strided_slice %1 {offsets = [0, 0], sizes = [8, 1], strides = [1, 1]} : vector<8x32xi32> to vector<8x1xi32>
    %6 = vector.broadcast %5 : vector<8x1xi32> to vector<8x32xi32>
    %7 = arith.cmpi eq, %1, %6 : vector<8x32xi32>
    %8 = arith.extui %7 : vector<8x32xi1> to vector<8x32xi32>
    %c0_i32_3 = arith.constant 0 : i32
    %9 = vector.broadcast %c0_i32_3 : i32 to vector<1x32xi32>
    %10 = arith.cmpi sgt, %3, %9 : vector<1x32xi32>
    %11 = arith.extui %10 : vector<1x32xi1> to vector<1x32xi32>
    %12 = vector.broadcast %11 : vector<1x32xi32> to vector<8x32xi32>
    %13 = arith.muli %8, %12 : vector<8x32xi32>
    %14 = arith.addi %4, %13 : vector<8x32xi32>
    %15 = vector.extract_strided_slice %1 {offsets = [0, 1], sizes = [8, 1], strides = [1, 1]} : vector<8x32xi32> to vector<8x1xi32>
    %16 = vector.broadcast %15 : vector<8x1xi32> to vector<8x32xi32>
    %17 = arith.cmpi eq, %1, %16 : vector<8x32xi32>
    %18 = arith.extui %17 : vector<8x32xi1> to vector<8x32xi32>
    %c1_i32 = arith.constant 1 : i32
    %19 = vector.broadcast %c1_i32 : i32 to vector<1x32xi32>
    %20 = arith.cmpi sgt, %3, %19 : vector<1x32xi32>
    %21 = arith.extui %20 : vector<1x32xi1> to vector<1x32xi32>
    %22 = vector.broadcast %21 : vector<1x32xi32> to vector<8x32xi32>
    %23 = arith.muli %18, %22 : vector<8x32xi32>
    %24 = arith.addi %14, %23 : vector<8x32xi32>
    %25 = vector.extract_strided_slice %1 {offsets = [0, 2], sizes = [8, 1], strides = [1, 1]} : vector<8x32xi32> to vector<8x1xi32>
    %26 = vector.broadcast %25 : vector<8x1xi32> to vector<8x32xi32>
    %27 = arith.cmpi eq, %1, %26 : vector<8x32xi32>
    %28 = arith.extui %27 : vector<8x32xi1> to vector<8x32xi32>
    %c2_i32 = arith.constant 2 : i32
    %29 = vector.broadcast %c2_i32 : i32 to vector<1x32xi32>
    %30 = arith.cmpi sgt, %3, %29 : vector<1x32xi32>
    %31 = arith.extui %30 : vector<1x32xi1> to vector<1x32xi32>
    %32 = vector.broadcast %31 : vector<1x32xi32> to vector<8x32xi32>
    %33 = arith.muli %28, %32 : vector<8x32xi32>
    %34 = arith.addi %24, %33 : vector<8x32xi32>
    %35 = vector.extract_strided_slice %1 {offsets = [0, 3], sizes = [8, 1], strides = [1, 1]} : vector<8x32xi32> to vector<8x1xi32>
    %36 = vector.broadcast %35 : vector<8x1xi32> to vector<8x32xi32>
    %37 = arith.cmpi eq, %1, %36 : vector<8x32xi32>
    %38 = arith.extui %37 : vector<8x32xi1> to vector<8x32xi32>
    %c3_i32 = arith.constant 3 : i32
    %39 = vector.broadcast %c3_i32 : i32 to vector<1x32xi32>
    %40 = arith.cmpi sgt, %3, %39 : vector<1x32xi32>
    %41 = arith.extui %40 : vector<1x32xi1> to vector<1x32xi32>
    %42 = vector.broadcast %41 : vector<1x32xi32> to vector<8x32xi32>
    %43 = arith.muli %38, %42 : vector<8x32xi32>
    %44 = arith.addi %34, %43 : vector<8x32xi32>
    %45 = vector.extract_strided_slice %1 {offsets = [0, 4], sizes = [8, 1], strides = [1, 1]} : vector<8x32xi32> to vector<8x1xi32>
    %46 = vector.broadcast %45 : vector<8x1xi32> to vector<8x32xi32>
    %47 = arith.cmpi eq, %1, %46 : vector<8x32xi32>
    %48 = arith.extui %47 : vector<8x32xi1> to vector<8x32xi32>
    %c4_i32 = arith.constant 4 : i32
    %49 = vector.broadcast %c4_i32 : i32 to vector<1x32xi32>
    %50 = arith.cmpi sgt, %3, %49 : vector<1x32xi32>
    %51 = arith.extui %50 : vector<1x32xi1> to vector<1x32xi32>
    %52 = vector.broadcast %51 : vector<1x32xi32> to vector<8x32xi32>
    %53 = arith.muli %48, %52 : vector<8x32xi32>
    %54 = arith.addi %44, %53 : vector<8x32xi32>
    %55 = vector.extract_strided_slice %1 {offsets = [0, 5], sizes = [8, 1], strides = [1, 1]} : vector<8x32xi32> to vector<8x1xi32>
    %56 = vector.broadcast %55 : vector<8x1xi32> to vector<8x32xi32>
    %57 = arith.cmpi eq, %1, %56 : vector<8x32xi32>
    %58 = arith.extui %57 : vector<8x32xi1> to vector<8x32xi32>
    %c5_i32 = arith.constant 5 : i32
    %59 = vector.broadcast %c5_i32 : i32 to vector<1x32xi32>
    %60 = arith.cmpi sgt, %3, %59 : vector<1x32xi32>
    %61 = arith.extui %60 : vector<1x32xi1> to vector<1x32xi32>
    %62 = vector.broadcast %61 : vector<1x32xi32> to vector<8x32xi32>
    %63 = arith.muli %58, %62 : vector<8x32xi32>
    %64 = arith.addi %54, %63 : vector<8x32xi32>
    %65 = vector.extract_strided_slice %1 {offsets = [0, 6], sizes = [8, 1], strides = [1, 1]} : vector<8x32xi32> to vector<8x1xi32>
    %66 = vector.broadcast %65 : vector<8x1xi32> to vector<8x32xi32>
    %67 = arith.cmpi eq, %1, %66 : vector<8x32xi32>
    %68 = arith.extui %67 : vector<8x32xi1> to vector<8x32xi32>
    %c6_i32 = arith.constant 6 : i32
    %69 = vector.broadcast %c6_i32 : i32 to vector<1x32xi32>
    %70 = arith.cmpi sgt, %3, %69 : vector<1x32xi32>
    %71 = arith.extui %70 : vector<1x32xi1> to vector<1x32xi32>
    %72 = vector.broadcast %71 : vector<1x32xi32> to vector<8x32xi32>
    %73 = arith.muli %68, %72 : vector<8x32xi32>
    %74 = arith.addi %64, %73 : vector<8x32xi32>
    %75 = vector.extract_strided_slice %1 {offsets = [0, 7], sizes = [8, 1], strides = [1, 1]} : vector<8x32xi32> to vector<8x1xi32>
    %76 = vector.broadcast %75 : vector<8x1xi32> to vector<8x32xi32>
    %77 = arith.cmpi eq, %1, %76 : vector<8x32xi32>
    %78 = arith.extui %77 : vector<8x32xi1> to vector<8x32xi32>
    %c7_i32 = arith.constant 7 : i32
    %79 = vector.broadcast %c7_i32 : i32 to vector<1x32xi32>
    %80 = arith.cmpi sgt, %3, %79 : vector<1x32xi32>
    %81 = arith.extui %80 : vector<1x32xi1> to vector<1x32xi32>
    %82 = vector.broadcast %81 : vector<1x32xi32> to vector<8x32xi32>
    %83 = arith.muli %78, %82 : vector<8x32xi32>
    %84 = arith.addi %74, %83 : vector<8x32xi32>
    %85 = vector.extract_strided_slice %1 {offsets = [0, 8], sizes = [8, 1], strides = [1, 1]} : vector<8x32xi32> to vector<8x1xi32>
    %86 = vector.broadcast %85 : vector<8x1xi32> to vector<8x32xi32>
    %87 = arith.cmpi eq, %1, %86 : vector<8x32xi32>
    %88 = arith.extui %87 : vector<8x32xi1> to vector<8x32xi32>
    %c8_i32 = arith.constant 8 : i32
    %89 = vector.broadcast %c8_i32 : i32 to vector<1x32xi32>
    %90 = arith.cmpi sgt, %3, %89 : vector<1x32xi32>
    %91 = arith.extui %90 : vector<1x32xi1> to vector<1x32xi32>
    %92 = vector.broadcast %91 : vector<1x32xi32> to vector<8x32xi32>
    %93 = arith.muli %88, %92 : vector<8x32xi32>
    %94 = arith.addi %84, %93 : vector<8x32xi32>
    %95 = vector.extract_strided_slice %1 {offsets = [0, 9], sizes = [8, 1], strides = [1, 1]} : vector<8x32xi32> to vector<8x1xi32>
    %96 = vector.broadcast %95 : vector<8x1xi32> to vector<8x32xi32>
    %97 = arith.cmpi eq, %1, %96 : vector<8x32xi32>
    %98 = arith.extui %97 : vector<8x32xi1> to vector<8x32xi32>
    %c9_i32 = arith.constant 9 : i32
    %99 = vector.broadcast %c9_i32 : i32 to vector<1x32xi32>
    %100 = arith.cmpi sgt, %3, %99 : vector<1x32xi32>
    %101 = arith.extui %100 : vector<1x32xi1> to vector<1x32xi32>
    %102 = vector.broadcast %101 : vector<1x32xi32> to vector<8x32xi32>
    %103 = arith.muli %98, %102 : vector<8x32xi32>
    %104 = arith.addi %94, %103 : vector<8x32xi32>
    %105 = vector.extract_strided_slice %1 {offsets = [0, 10], sizes = [8, 1], strides = [1, 1]} : vector<8x32xi32> to vector<8x1xi32>
    %106 = vector.broadcast %105 : vector<8x1xi32> to vector<8x32xi32>
    %107 = arith.cmpi eq, %1, %106 : vector<8x32xi32>
    %108 = arith.extui %107 : vector<8x32xi1> to vector<8x32xi32>
    %c10_i32 = arith.constant 10 : i32
    %109 = vector.broadcast %c10_i32 : i32 to vector<1x32xi32>
    %110 = arith.cmpi sgt, %3, %109 : vector<1x32xi32>
    %111 = arith.extui %110 : vector<1x32xi1> to vector<1x32xi32>
    %112 = vector.broadcast %111 : vector<1x32xi32> to vector<8x32xi32>
    %113 = arith.muli %108, %112 : vector<8x32xi32>
    %114 = arith.addi %104, %113 : vector<8x32xi32>
    %115 = vector.extract_strided_slice %1 {offsets = [0, 11], sizes = [8, 1], strides = [1, 1]} : vector<8x32xi32> to vector<8x1xi32>
    %116 = vector.broadcast %115 : vector<8x1xi32> to vector<8x32xi32>
    %117 = arith.cmpi eq, %1, %116 : vector<8x32xi32>
    %118 = arith.extui %117 : vector<8x32xi1> to vector<8x32xi32>
    %c11_i32 = arith.constant 11 : i32
    %119 = vector.broadcast %c11_i32 : i32 to vector<1x32xi32>
    %120 = arith.cmpi sgt, %3, %119 : vector<1x32xi32>
    %121 = arith.extui %120 : vector<1x32xi1> to vector<1x32xi32>
    %122 = vector.broadcast %121 : vector<1x32xi32> to vector<8x32xi32>
    %123 = arith.muli %118, %122 : vector<8x32xi32>
    %124 = arith.addi %114, %123 : vector<8x32xi32>
    %125 = vector.extract_strided_slice %1 {offsets = [0, 12], sizes = [8, 1], strides = [1, 1]} : vector<8x32xi32> to vector<8x1xi32>
    %126 = vector.broadcast %125 : vector<8x1xi32> to vector<8x32xi32>
    %127 = arith.cmpi eq, %1, %126 : vector<8x32xi32>
    %128 = arith.extui %127 : vector<8x32xi1> to vector<8x32xi32>
    %c12_i32 = arith.constant 12 : i32
    %129 = vector.broadcast %c12_i32 : i32 to vector<1x32xi32>
    %130 = arith.cmpi sgt, %3, %129 : vector<1x32xi32>
    %131 = arith.extui %130 : vector<1x32xi1> to vector<1x32xi32>
    %132 = vector.broadcast %131 : vector<1x32xi32> to vector<8x32xi32>
    %133 = arith.muli %128, %132 : vector<8x32xi32>
    %134 = arith.addi %124, %133 : vector<8x32xi32>
    %135 = vector.extract_strided_slice %1 {offsets = [0, 13], sizes = [8, 1], strides = [1, 1]} : vector<8x32xi32> to vector<8x1xi32>
    %136 = vector.broadcast %135 : vector<8x1xi32> to vector<8x32xi32>
    %137 = arith.cmpi eq, %1, %136 : vector<8x32xi32>
    %138 = arith.extui %137 : vector<8x32xi1> to vector<8x32xi32>
    %c13_i32 = arith.constant 13 : i32
    %139 = vector.broadcast %c13_i32 : i32 to vector<1x32xi32>
    %140 = arith.cmpi sgt, %3, %139 : vector<1x32xi32>
    %141 = arith.extui %140 : vector<1x32xi1> to vector<1x32xi32>
    %142 = vector.broadcast %141 : vector<1x32xi32> to vector<8x32xi32>
    %143 = arith.muli %138, %142 : vector<8x32xi32>
    %144 = arith.addi %134, %143 : vector<8x32xi32>
    %145 = vector.extract_strided_slice %1 {offsets = [0, 14], sizes = [8, 1], strides = [1, 1]} : vector<8x32xi32> to vector<8x1xi32>
    %146 = vector.broadcast %145 : vector<8x1xi32> to vector<8x32xi32>
    %147 = arith.cmpi eq, %1, %146 : vector<8x32xi32>
    %148 = arith.extui %147 : vector<8x32xi1> to vector<8x32xi32>
    %c14_i32 = arith.constant 14 : i32
    %149 = vector.broadcast %c14_i32 : i32 to vector<1x32xi32>
    %150 = arith.cmpi sgt, %3, %149 : vector<1x32xi32>
    %151 = arith.extui %150 : vector<1x32xi1> to vector<1x32xi32>
    %152 = vector.broadcast %151 : vector<1x32xi32> to vector<8x32xi32>
    %153 = arith.muli %148, %152 : vector<8x32xi32>
    %154 = arith.addi %144, %153 : vector<8x32xi32>
    %155 = vector.extract_strided_slice %1 {offsets = [0, 15], sizes = [8, 1], strides = [1, 1]} : vector<8x32xi32> to vector<8x1xi32>
    %156 = vector.broadcast %155 : vector<8x1xi32> to vector<8x32xi32>
    %157 = arith.cmpi eq, %1, %156 : vector<8x32xi32>
    %158 = arith.extui %157 : vector<8x32xi1> to vector<8x32xi32>
    %c15_i32 = arith.constant 15 : i32
    %159 = vector.broadcast %c15_i32 : i32 to vector<1x32xi32>
    %160 = arith.cmpi sgt, %3, %159 : vector<1x32xi32>
    %161 = arith.extui %160 : vector<1x32xi1> to vector<1x32xi32>
    %162 = vector.broadcast %161 : vector<1x32xi32> to vector<8x32xi32>
    %163 = arith.muli %158, %162 : vector<8x32xi32>
    %164 = arith.addi %154, %163 : vector<8x32xi32>
    %165 = vector.extract_strided_slice %1 {offsets = [0, 16], sizes = [8, 1], strides = [1, 1]} : vector<8x32xi32> to vector<8x1xi32>
    %166 = vector.broadcast %165 : vector<8x1xi32> to vector<8x32xi32>
    %167 = arith.cmpi eq, %1, %166 : vector<8x32xi32>
    %168 = arith.extui %167 : vector<8x32xi1> to vector<8x32xi32>
    %c16_i32 = arith.constant 16 : i32
    %169 = vector.broadcast %c16_i32 : i32 to vector<1x32xi32>
    %170 = arith.cmpi sgt, %3, %169 : vector<1x32xi32>
    %171 = arith.extui %170 : vector<1x32xi1> to vector<1x32xi32>
    %172 = vector.broadcast %171 : vector<1x32xi32> to vector<8x32xi32>
    %173 = arith.muli %168, %172 : vector<8x32xi32>
    %174 = arith.addi %164, %173 : vector<8x32xi32>
    %175 = vector.extract_strided_slice %1 {offsets = [0, 17], sizes = [8, 1], strides = [1, 1]} : vector<8x32xi32> to vector<8x1xi32>
    %176 = vector.broadcast %175 : vector<8x1xi32> to vector<8x32xi32>
    %177 = arith.cmpi eq, %1, %176 : vector<8x32xi32>
    %178 = arith.extui %177 : vector<8x32xi1> to vector<8x32xi32>
    %c17_i32 = arith.constant 17 : i32
    %179 = vector.broadcast %c17_i32 : i32 to vector<1x32xi32>
    %180 = arith.cmpi sgt, %3, %179 : vector<1x32xi32>
    %181 = arith.extui %180 : vector<1x32xi1> to vector<1x32xi32>
    %182 = vector.broadcast %181 : vector<1x32xi32> to vector<8x32xi32>
    %183 = arith.muli %178, %182 : vector<8x32xi32>
    %184 = arith.addi %174, %183 : vector<8x32xi32>
    %185 = vector.extract_strided_slice %1 {offsets = [0, 18], sizes = [8, 1], strides = [1, 1]} : vector<8x32xi32> to vector<8x1xi32>
    %186 = vector.broadcast %185 : vector<8x1xi32> to vector<8x32xi32>
    %187 = arith.cmpi eq, %1, %186 : vector<8x32xi32>
    %188 = arith.extui %187 : vector<8x32xi1> to vector<8x32xi32>
    %c18_i32 = arith.constant 18 : i32
    %189 = vector.broadcast %c18_i32 : i32 to vector<1x32xi32>
    %190 = arith.cmpi sgt, %3, %189 : vector<1x32xi32>
    %191 = arith.extui %190 : vector<1x32xi1> to vector<1x32xi32>
    %192 = vector.broadcast %191 : vector<1x32xi32> to vector<8x32xi32>
    %193 = arith.muli %188, %192 : vector<8x32xi32>
    %194 = arith.addi %184, %193 : vector<8x32xi32>
    %195 = vector.extract_strided_slice %1 {offsets = [0, 19], sizes = [8, 1], strides = [1, 1]} : vector<8x32xi32> to vector<8x1xi32>
    %196 = vector.broadcast %195 : vector<8x1xi32> to vector<8x32xi32>
    %197 = arith.cmpi eq, %1, %196 : vector<8x32xi32>
    %198 = arith.extui %197 : vector<8x32xi1> to vector<8x32xi32>
    %c19_i32 = arith.constant 19 : i32
    %199 = vector.broadcast %c19_i32 : i32 to vector<1x32xi32>
    %200 = arith.cmpi sgt, %3, %199 : vector<1x32xi32>
    %201 = arith.extui %200 : vector<1x32xi1> to vector<1x32xi32>
    %202 = vector.broadcast %201 : vector<1x32xi32> to vector<8x32xi32>
    %203 = arith.muli %198, %202 : vector<8x32xi32>
    %204 = arith.addi %194, %203 : vector<8x32xi32>
    %205 = vector.extract_strided_slice %1 {offsets = [0, 20], sizes = [8, 1], strides = [1, 1]} : vector<8x32xi32> to vector<8x1xi32>
    %206 = vector.broadcast %205 : vector<8x1xi32> to vector<8x32xi32>
    %207 = arith.cmpi eq, %1, %206 : vector<8x32xi32>
    %208 = arith.extui %207 : vector<8x32xi1> to vector<8x32xi32>
    %c20_i32 = arith.constant 20 : i32
    %209 = vector.broadcast %c20_i32 : i32 to vector<1x32xi32>
    %210 = arith.cmpi sgt, %3, %209 : vector<1x32xi32>
    %211 = arith.extui %210 : vector<1x32xi1> to vector<1x32xi32>
    %212 = vector.broadcast %211 : vector<1x32xi32> to vector<8x32xi32>
    %213 = arith.muli %208, %212 : vector<8x32xi32>
    %214 = arith.addi %204, %213 : vector<8x32xi32>
    %215 = vector.extract_strided_slice %1 {offsets = [0, 21], sizes = [8, 1], strides = [1, 1]} : vector<8x32xi32> to vector<8x1xi32>
    %216 = vector.broadcast %215 : vector<8x1xi32> to vector<8x32xi32>
    %217 = arith.cmpi eq, %1, %216 : vector<8x32xi32>
    %218 = arith.extui %217 : vector<8x32xi1> to vector<8x32xi32>
    %c21_i32 = arith.constant 21 : i32
    %219 = vector.broadcast %c21_i32 : i32 to vector<1x32xi32>
    %220 = arith.cmpi sgt, %3, %219 : vector<1x32xi32>
    %221 = arith.extui %220 : vector<1x32xi1> to vector<1x32xi32>
    %222 = vector.broadcast %221 : vector<1x32xi32> to vector<8x32xi32>
    %223 = arith.muli %218, %222 : vector<8x32xi32>
    %224 = arith.addi %214, %223 : vector<8x32xi32>
    %225 = vector.extract_strided_slice %1 {offsets = [0, 22], sizes = [8, 1], strides = [1, 1]} : vector<8x32xi32> to vector<8x1xi32>
    %226 = vector.broadcast %225 : vector<8x1xi32> to vector<8x32xi32>
    %227 = arith.cmpi eq, %1, %226 : vector<8x32xi32>
    %228 = arith.extui %227 : vector<8x32xi1> to vector<8x32xi32>
    %c22_i32 = arith.constant 22 : i32
    %229 = vector.broadcast %c22_i32 : i32 to vector<1x32xi32>
    %230 = arith.cmpi sgt, %3, %229 : vector<1x32xi32>
    %231 = arith.extui %230 : vector<1x32xi1> to vector<1x32xi32>
    %232 = vector.broadcast %231 : vector<1x32xi32> to vector<8x32xi32>
    %233 = arith.muli %228, %232 : vector<8x32xi32>
    %234 = arith.addi %224, %233 : vector<8x32xi32>
    %235 = vector.extract_strided_slice %1 {offsets = [0, 23], sizes = [8, 1], strides = [1, 1]} : vector<8x32xi32> to vector<8x1xi32>
    %236 = vector.broadcast %235 : vector<8x1xi32> to vector<8x32xi32>
    %237 = arith.cmpi eq, %1, %236 : vector<8x32xi32>
    %238 = arith.extui %237 : vector<8x32xi1> to vector<8x32xi32>
    %c23_i32 = arith.constant 23 : i32
    %239 = vector.broadcast %c23_i32 : i32 to vector<1x32xi32>
    %240 = arith.cmpi sgt, %3, %239 : vector<1x32xi32>
    %241 = arith.extui %240 : vector<1x32xi1> to vector<1x32xi32>
    %242 = vector.broadcast %241 : vector<1x32xi32> to vector<8x32xi32>
    %243 = arith.muli %238, %242 : vector<8x32xi32>
    %244 = arith.addi %234, %243 : vector<8x32xi32>
    %245 = vector.extract_strided_slice %1 {offsets = [0, 24], sizes = [8, 1], strides = [1, 1]} : vector<8x32xi32> to vector<8x1xi32>
    %246 = vector.broadcast %245 : vector<8x1xi32> to vector<8x32xi32>
    %247 = arith.cmpi eq, %1, %246 : vector<8x32xi32>
    %248 = arith.extui %247 : vector<8x32xi1> to vector<8x32xi32>
    %c24_i32 = arith.constant 24 : i32
    %249 = vector.broadcast %c24_i32 : i32 to vector<1x32xi32>
    %250 = arith.cmpi sgt, %3, %249 : vector<1x32xi32>
    %251 = arith.extui %250 : vector<1x32xi1> to vector<1x32xi32>
    %252 = vector.broadcast %251 : vector<1x32xi32> to vector<8x32xi32>
    %253 = arith.muli %248, %252 : vector<8x32xi32>
    %254 = arith.addi %244, %253 : vector<8x32xi32>
    %255 = vector.extract_strided_slice %1 {offsets = [0, 25], sizes = [8, 1], strides = [1, 1]} : vector<8x32xi32> to vector<8x1xi32>
    %256 = vector.broadcast %255 : vector<8x1xi32> to vector<8x32xi32>
    %257 = arith.cmpi eq, %1, %256 : vector<8x32xi32>
    %258 = arith.extui %257 : vector<8x32xi1> to vector<8x32xi32>
    %c25_i32 = arith.constant 25 : i32
    %259 = vector.broadcast %c25_i32 : i32 to vector<1x32xi32>
    %260 = arith.cmpi sgt, %3, %259 : vector<1x32xi32>
    %261 = arith.extui %260 : vector<1x32xi1> to vector<1x32xi32>
    %262 = vector.broadcast %261 : vector<1x32xi32> to vector<8x32xi32>
    %263 = arith.muli %258, %262 : vector<8x32xi32>
    %264 = arith.addi %254, %263 : vector<8x32xi32>
    %265 = vector.extract_strided_slice %1 {offsets = [0, 26], sizes = [8, 1], strides = [1, 1]} : vector<8x32xi32> to vector<8x1xi32>
    %266 = vector.broadcast %265 : vector<8x1xi32> to vector<8x32xi32>
    %267 = arith.cmpi eq, %1, %266 : vector<8x32xi32>
    %268 = arith.extui %267 : vector<8x32xi1> to vector<8x32xi32>
    %c26_i32 = arith.constant 26 : i32
    %269 = vector.broadcast %c26_i32 : i32 to vector<1x32xi32>
    %270 = arith.cmpi sgt, %3, %269 : vector<1x32xi32>
    %271 = arith.extui %270 : vector<1x32xi1> to vector<1x32xi32>
    %272 = vector.broadcast %271 : vector<1x32xi32> to vector<8x32xi32>
    %273 = arith.muli %268, %272 : vector<8x32xi32>
    %274 = arith.addi %264, %273 : vector<8x32xi32>
    %275 = vector.extract_strided_slice %1 {offsets = [0, 27], sizes = [8, 1], strides = [1, 1]} : vector<8x32xi32> to vector<8x1xi32>
    %276 = vector.broadcast %275 : vector<8x1xi32> to vector<8x32xi32>
    %277 = arith.cmpi eq, %1, %276 : vector<8x32xi32>
    %278 = arith.extui %277 : vector<8x32xi1> to vector<8x32xi32>
    %c27_i32 = arith.constant 27 : i32
    %279 = vector.broadcast %c27_i32 : i32 to vector<1x32xi32>
    %280 = arith.cmpi sgt, %3, %279 : vector<1x32xi32>
    %281 = arith.extui %280 : vector<1x32xi1> to vector<1x32xi32>
    %282 = vector.broadcast %281 : vector<1x32xi32> to vector<8x32xi32>
    %283 = arith.muli %278, %282 : vector<8x32xi32>
    %284 = arith.addi %274, %283 : vector<8x32xi32>
    %285 = vector.extract_strided_slice %1 {offsets = [0, 28], sizes = [8, 1], strides = [1, 1]} : vector<8x32xi32> to vector<8x1xi32>
    %286 = vector.broadcast %285 : vector<8x1xi32> to vector<8x32xi32>
    %287 = arith.cmpi eq, %1, %286 : vector<8x32xi32>
    %288 = arith.extui %287 : vector<8x32xi1> to vector<8x32xi32>
    %c28_i32 = arith.constant 28 : i32
    %289 = vector.broadcast %c28_i32 : i32 to vector<1x32xi32>
    %290 = arith.cmpi sgt, %3, %289 : vector<1x32xi32>
    %291 = arith.extui %290 : vector<1x32xi1> to vector<1x32xi32>
    %292 = vector.broadcast %291 : vector<1x32xi32> to vector<8x32xi32>
    %293 = arith.muli %288, %292 : vector<8x32xi32>
    %294 = arith.addi %284, %293 : vector<8x32xi32>
    %295 = vector.extract_strided_slice %1 {offsets = [0, 29], sizes = [8, 1], strides = [1, 1]} : vector<8x32xi32> to vector<8x1xi32>
    %296 = vector.broadcast %295 : vector<8x1xi32> to vector<8x32xi32>
    %297 = arith.cmpi eq, %1, %296 : vector<8x32xi32>
    %298 = arith.extui %297 : vector<8x32xi1> to vector<8x32xi32>
    %c29_i32 = arith.constant 29 : i32
    %299 = vector.broadcast %c29_i32 : i32 to vector<1x32xi32>
    %300 = arith.cmpi sgt, %3, %299 : vector<1x32xi32>
    %301 = arith.extui %300 : vector<1x32xi1> to vector<1x32xi32>
    %302 = vector.broadcast %301 : vector<1x32xi32> to vector<8x32xi32>
    %303 = arith.muli %298, %302 : vector<8x32xi32>
    %304 = arith.addi %294, %303 : vector<8x32xi32>
    %305 = vector.extract_strided_slice %1 {offsets = [0, 30], sizes = [8, 1], strides = [1, 1]} : vector<8x32xi32> to vector<8x1xi32>
    %306 = vector.broadcast %305 : vector<8x1xi32> to vector<8x32xi32>
    %307 = arith.cmpi eq, %1, %306 : vector<8x32xi32>
    %308 = arith.extui %307 : vector<8x32xi1> to vector<8x32xi32>
    %c30_i32 = arith.constant 30 : i32
    %309 = vector.broadcast %c30_i32 : i32 to vector<1x32xi32>
    %310 = arith.cmpi sgt, %3, %309 : vector<1x32xi32>
    %311 = arith.extui %310 : vector<1x32xi1> to vector<1x32xi32>
    %312 = vector.broadcast %311 : vector<1x32xi32> to vector<8x32xi32>
    %313 = arith.muli %308, %312 : vector<8x32xi32>
    %314 = arith.addi %304, %313 : vector<8x32xi32>
    %c0_i32_4 = arith.constant 0 : i32
    %315 = vector.broadcast %c0_i32_4 : i32 to vector<8x32xi32>
    %316 = arith.cmpi eq, %314, %315 : vector<8x32xi32>
    %c0_i32_5 = arith.constant 0 : i32
    %317 = vector.broadcast %c0_i32_5 : i32 to vector<8x32xi32>
    %318 = arith.cmpi ne, %1, %317 : vector<8x32xi32>
    %319 = arith.andi %316, %318 : vector<8x32xi1>
    %cst = arith.constant 1.000000e+00 : f32
    %cst_6 = arith.constant 0.000000e+00 : f32
    %320 = vector.broadcast %cst : f32 to vector<8x32xf32>
    %321 = vector.broadcast %cst_6 : f32 to vector<8x32xf32>
    %322 = arith.select %319, %320, %321 : vector<8x32xi1>, vector<8x32xf32>
    %c0_7 = arith.constant 0 : index
    %c0_8 = arith.constant 0 : index
    %323 = vector.load %arg3[%c0_7, %c0_8] : memref<128x161xf32, #tpu.memory_space<vmem>>, vector<128x161xf32>
    %cst_9 = arith.constant dense<0.000000e+00> : vector<8x161xf32>
    %324 = tpu.matmul %0, %323, %cst_9 {dimension_numbers = #tpu.dot_dimension_numbers<[1], [0], [0], [1], [0, 0, 1, 1], [], []>} : vector<8x128xf32>, vector<128x161xf32>, vector<8x161xf32> -> vector<8x161xf32>
    %c128 = arith.constant 128 : index
    %c0_10 = arith.constant 0 : index
    %325 = vector.load %arg4[%c128, %c0_10] : memref<208x32xf32, #tpu.memory_space<vmem>>, vector<32x32xf32>
    %cst_11 = arith.constant dense<0.000000e+00> : vector<8x32xf32>
    %326 = tpu.matmul %322, %325, %cst_11 {dimension_numbers = #tpu.dot_dimension_numbers<[1], [0], [0], [1], [0, 0, 1, 1], [], []>} : vector<8x32xf32>, vector<32x32xf32>, vector<8x32xf32> -> vector<8x32xf32>
    %327 = vector.extract_strided_slice %324 {offsets = [0, 0], sizes = [8, 128], strides = [1, 1]} : vector<8x161xf32> to vector<8x128xf32>
    %328 = math.tanh %327 : vector<8x128xf32>
    %329 = vector.extract_strided_slice %324 {offsets = [0, 128], sizes = [8, 32], strides = [1, 1]} : vector<8x161xf32> to vector<8x32xf32>
    %330 = arith.addf %329, %326 : vector<8x32xf32>
    %331 = math.tanh %330 : vector<8x32xf32>
    %332 = vector.extract_strided_slice %324 {offsets = [0, 160], sizes = [8, 1], strides = [1, 1]} : vector<8x161xf32> to vector<8x1xf32>
    %c0_12 = arith.constant 0 : index
    %c0_13 = arith.constant 0 : index
    %333 = vector.load %arg4[%c0_12, %c0_13] : memref<208x32xf32, #tpu.memory_space<vmem>>, vector<128x32xf32>
    %cst_14 = arith.constant dense<0.000000e+00> : vector<8x32xf32>
    %334 = tpu.matmul %328, %333, %cst_14 {dimension_numbers = #tpu.dot_dimension_numbers<[1], [0], [0], [1], [0, 0, 1, 1], [], []>} : vector<8x128xf32>, vector<128x32xf32>, vector<8x32xf32> -> vector<8x32xf32>
    %c160 = arith.constant 160 : index
    %c0_15 = arith.constant 0 : index
    %335 = vector.load %arg4[%c160, %c0_15] : memref<208x32xf32, #tpu.memory_space<vmem>>, vector<1x32xf32>
    %336 = vector.broadcast %335 : vector<1x32xf32> to vector<8x32xf32>
    %337 = arith.addf %334, %336 : vector<8x32xf32>
    %c168 = arith.constant 168 : index
    %c0_16 = arith.constant 0 : index
    %338 = vector.load %arg4[%c168, %c0_16] : memref<208x32xf32, #tpu.memory_space<vmem>>, vector<32x2xf32>
    %cst_17 = arith.constant dense<0.000000e+00> : vector<8x2xf32>
    %339 = tpu.matmul %331, %338, %cst_17 {dimension_numbers = #tpu.dot_dimension_numbers<[1], [0], [0], [1], [0, 0, 1, 1], [], []>} : vector<8x32xf32>, vector<32x2xf32>, vector<8x2xf32> -> vector<8x2xf32>
    %c200 = arith.constant 200 : index
    %c0_18 = arith.constant 0 : index
    %340 = vector.load %arg4[%c200, %c0_18] : memref<208x32xf32, #tpu.memory_space<vmem>>, vector<1x2xf32>
    %341 = vector.broadcast %340 : vector<1x2xf32> to vector<8x2xf32>
    %342 = arith.addf %339, %341 : vector<8x2xf32>
    %343 = vector.extract_strided_slice %342 {offsets = [0, 0], sizes = [8, 1], strides = [1, 1]} : vector<8x2xf32> to vector<8x1xf32>
    %344 = arith.subf %343, %332 : vector<8x1xf32>
    %345 = arith.negf %344 : vector<8x1xf32>
    %346 = math.exp %345 : vector<8x1xf32>
    %cst_19 = arith.constant 1.000000e+00 : f32
    %347 = vector.broadcast %cst_19 : f32 to vector<8x1xf32>
    %348 = arith.addf %347, %346 : vector<8x1xf32>
    %349 = arith.divf %347, %348 : vector<8x1xf32>
    %350 = vector.extract_strided_slice %342 {offsets = [0, 1], sizes = [8, 1], strides = [1, 1]} : vector<8x2xf32> to vector<8x1xf32>
    %351 = arith.negf %350 : vector<8x1xf32>
    %352 = math.exp %351 : vector<8x1xf32>
    %cst_20 = arith.constant 1.000000e+00 : f32
    %353 = vector.broadcast %cst_20 : f32 to vector<8x1xf32>
    %354 = arith.addf %353, %352 : vector<8x1xf32>
    %355 = arith.divf %353, %354 : vector<8x1xf32>
    %356 = vector.broadcast %355 : vector<8x1xf32> to vector<8x32xf32>
    %357 = arith.mulf %2, %356 : vector<8x32xf32>
    %358 = arith.subf %337, %357 : vector<8x32xf32>
    %cst_21 = arith.constant dense<0xFF800000> : vector<8xf32>
    %359 = vector.multi_reduction <maximumf>, %358, %cst_21 [1] : vector<8x32xf32> to vector<8xf32>
    %360 = vector.shape_cast %359 : vector<8xf32> to vector<8x1xf32>
    %361 = vector.broadcast %360 : vector<8x1xf32> to vector<8x32xf32>
    %362 = arith.subf %358, %361 : vector<8x32xf32>
    %363 = math.exp %362 : vector<8x32xf32>
    %cst_22 = arith.constant dense<0.000000e+00> : vector<8xf32>
    %364 = vector.multi_reduction <add>, %363, %cst_22 [1] : vector<8x32xf32> to vector<8xf32>
    %365 = vector.shape_cast %364 : vector<8xf32> to vector<8x1xf32>
    %366 = vector.broadcast %365 : vector<8x1xf32> to vector<8x32xf32>
    %367 = arith.divf %363, %366 : vector<8x32xf32>
    %c0_23 = arith.constant 0 : index
    %c0_24 = arith.constant 0 : index
    %368 = vector.load %arg5[%c0_23, %c0_24] : memref<8x128xf32, #tpu.memory_space<vmem>>, vector<8x32xf32>
    tpu.vector_store %arg5[%c0_23, %c0_24], %367 {strides = array<i32>} : memref<8x128xf32, #tpu.memory_space<vmem>>, vector<8x32xf32>,
    %c0_25 = arith.constant 0 : index
    %c32 = arith.constant 32 : index
    %369 = vector.load %arg5[%c0_25, %c32] : memref<8x128xf32, #tpu.memory_space<vmem>>, vector<8x32xf32>
    tpu.vector_store %arg5[%c0_25, %c32], %337 {strides = array<i32>} : memref<8x128xf32, #tpu.memory_space<vmem>>, vector<8x32xf32>,
    %c0_26 = arith.constant 0 : index
    %c64 = arith.constant 64 : index
    %370 = vector.load %arg5[%c0_26, %c64] : memref<8x128xf32, #tpu.memory_space<vmem>>, vector<8x1xf32>
    tpu.vector_store %arg5[%c0_26, %c64], %355 {strides = array<i32>} : memref<8x128xf32, #tpu.memory_space<vmem>>, vector<8x1xf32>,
    %c0_27 = arith.constant 0 : index
    %c65 = arith.constant 65 : index
    %371 = vector.load %arg5[%c0_27, %c65] : memref<8x128xf32, #tpu.memory_space<vmem>>, vector<8x1xf32>
    tpu.vector_store %arg5[%c0_27, %c65], %349 {strides = array<i32>} : memref<8x128xf32, #tpu.memory_space<vmem>>, vector<8x1xf32>,
    %cst_28 = arith.constant 0.000000e+00 : f32
    %372 = vector.broadcast %cst_28 : f32 to vector<8x62xf32>
    %c0_29 = arith.constant 0 : index
    %c66 = arith.constant 66 : index
    %373 = vector.load %arg5[%c0_29, %c66] : memref<8x128xf32, #tpu.memory_space<vmem>>, vector<8x62xf32>
    tpu.vector_store %arg5[%c0_29, %c66], %372 {strides = array<i32>} : memref<8x128xf32, #tpu.memory_space<vmem>>, vector<8x62xf32>,
    return
  }
  func.func @transform_0(%arg0: i32) -> (i32, i32) {
    %c0_i32 = arith.constant 0 : i32
    %c0_i32_0 = arith.constant 0 : i32
    return %arg0, %c0_i32 : i32, i32
  }
  func.func @transform_1(%arg0: i32) -> (i32, i32) {
    %c0_i32 = arith.constant 0 : i32
    %c0_i32_0 = arith.constant 0 : i32
    return %arg0, %c0_i32 : i32, i32
  }
  func.func @transform_2(%arg0: i32) -> (i32, i32) {
    %c0_i32 = arith.constant 0 : i32
    %c0_i32_0 = arith.constant 0 : i32
    %c0_i32_1 = arith.constant 0 : i32
    return %c0_i32, %c0_i32_0 : i32, i32
  }
  func.func @transform_3(%arg0: i32) -> (i32, i32) {
    %c0_i32 = arith.constant 0 : i32
    %c0_i32_0 = arith.constant 0 : i32
    %c0_i32_1 = arith.constant 0 : i32
    return %c0_i32, %c0_i32_0 : i32, i32
  }
  func.func @transform_4(%arg0: i32) -> (i32, i32) {
    %c0_i32 = arith.constant 0 : i32
    %c0_i32_0 = arith.constant 0 : i32
    return %arg0, %c0_i32 : i32, i32
  }
}

</mosaic_0001>

<llo_original>
// kernel: tpu_custom_call.1
$region0: #{tpu_custom_call.1}
  #allocation0 [shape = 'u32[]', space=smem, size = 0x4, offset = 0x4, fixed_abs, tag = 'smem constant byte address 0x4 - core index']
  #allocation1 [shape = 'u32[144,128]{1,0:T(1,128)}', space=vmem, size = 0x12000, scoped, tag = 'internal scratch']
  %s0 = inlined_call_operand.vmem [shape: f32[16,128], index: 0, kind: input, shape index: {}]
  %s1 = inlined_call_operand.vmem [shape: s32[16,32], index: 1, kind: input, shape index: {}]
  %s2 = inlined_call_operand.vmem [shape: f32[128,161], index: 2, kind: input, shape index: {}]
  %s3 = inlined_call_operand.vmem [shape: f32[208,32], index: 3, kind: input, shape index: {}]
  %s4 = inlined_call_operand.hbm [shape: f32[16,128], index: 4, kind: output, shape index: {}]
  %s5 = sld [smem:[#allocation0]]
  $region49: #{tpu_custom_call.1} parent=0
    _
  %s7 = ssub.s32 1, %s5
  %s8 = scalar_select 0, %s7, %s5
  $region1: #{tpu_custom_call.1} parent=0
    #allocation2 [shape = 'u8[8192]{0}', space=vmem, size = 0x2000, scoped, tag = 'output window, operand 0']
    #allocation3 [shape = 's32[2]{0}', space=sflag, size = 0x8, scoped, tag = 'scoped memory for tpu_custom_call.1']
    %9 = vsyncpa [#allocation3], 0
    %s10 = scalar_lea.sflag [#allocation3], 1
    %11 = vsyncpa %s10, 0
    loop: start=0, step=1, limit=4
    $region2: #{tpu_custom_call.1} parent=1 // loop_pre_header
      _
    $region3: #{tpu_custom_call.1} parent=1 // loop_header
      %s13 = sphi 0, %s17
      %p14 = scmp.ge.s32.totalorder %s13, 4
      %s23 = sphi 0, %s25
      %s26 = sphi 0, %s23
      %s27 = sphi 0, %s26
      %s43 = sphi 0, %s27
      %s49 = sphi 0, %s51
      %s52 = sphi 0, %s49
      %s53 = sphi 0, %s52
      %s69 = sphi 0, %s53
      %s73 = sphi 0, %s73
      %s75 = sphi 0, %s73
      %s76 = sphi 0, %s75
      %s90 = sphi 0, %s76
      %s94 = sphi 0, %s94
      %s96 = sphi 0, %s94
      %s97 = sphi 0, %s96
      %s111 = sphi 0, %s97
      %s117 = sphi 0, %s119
      %s120 = sphi 0, %s117
      %s121 = sphi 0, %s120
      %s137 = sphi 0, %s121
    $region4: #{tpu_custom_call.1} parent=1 // loop_header_branch
      %16 = sbr.rel (%p14) target = $region8
    $region5: #{tpu_custom_call.1} parent=1 // loop_body
      %s18 = ssub.s32 %s13, 1
      %s19 = ssub.s32 %s13, 2
      %s20 = sadd.s32 %s13, 1
      %s21 = ssub.s32 %s13, %s20
      %p22 = scmp.eq.s32.totalorder %s21, 0
      %s24 = sadd.s32 %s23, 1
      %s25 = scalar_select %p22, %s23, %s24
      %p28 = pneg %p22
      %p29 = scmp.eq.s32.totalorder %s13, 1
      %p30 = por %p28, %p29
      %p31 = scmp.ne.s32.totalorder %s23, %s26
      %p32 = scmp.eq.s32.totalorder %s13, 0
      %p33 = por %p31, %p32
      %p34 = scmp.ne.s32.totalorder %s23, %s26
      %p35 = scmp.eq.s32.totalorder %s18, 1
      %p36 = por %p34, %p35
      %p37 = scmp.ne.s32.totalorder %s26, %s27
      %p38 = scmp.eq.s32.totalorder %s18, 0
      %p39 = por %p37, %p38
      %p40 = scmp.ne.s32.totalorder %s26, %s27
      %p41 = scmp.eq.s32.totalorder %s19, 1
      %p42 = por %p40, %p41
      %p44 = scmp.ne.s32.totalorder %s27, %s43
      %p45 = scmp.eq.s32.totalorder %s19, 0
      %p46 = por %p44, %p45
      %s47 = ssub.s32 %s13, %s20
      %p48 = scmp.eq.s32.totalorder %s47, 0
      %s50 = sadd.s32 %s49, 1
      %s51 = scalar_select %p48, %s49, %s50
      %p54 = pneg %p48
      %p55 = scmp.eq.s32.totalorder %s13, 1
      %p56 = por %p54, %p55
      %p57 = scmp.ne.s32.totalorder %s49, %s52
      %p58 = scmp.eq.s32.totalorder %s13, 0
      %p59 = por %p57, %p58
      %p60 = scmp.ne.s32.totalorder %s49, %s52
      %p61 = scmp.eq.s32.totalorder %s18, 1
      %p62 = por %p60, %p61
      %p63 = scmp.ne.s32.totalorder %s52, %s53
      %p64 = scmp.eq.s32.totalorder %s18, 0
      %p65 = por %p63, %p64
      %p66 = scmp.ne.s32.totalorder %s52, %s53
      %p67 = scmp.eq.s32.totalorder %s19, 1
      %p68 = por %p66, %p67
      %p70 = scmp.ne.s32.totalorder %s53, %s69
      %p71 = scmp.eq.s32.totalorder %s19, 0
      %p72 = por %p70, %p71
      %s74 = sadd.s32 %s73, 1
      %p77 = scmp.eq.s32.totalorder %s13, 1
      %p78 = scmp.ne.s32.totalorder %s73, %s75
      %p79 = scmp.eq.s32.totalorder %s13, 0
      %p80 = por %p78, %p79
      %p81 = scmp.ne.s32.totalorder %s73, %s75
      %p82 = scmp.eq.s32.totalorder %s18, 1
      %p83 = por %p81, %p82
      %p84 = scmp.ne.s32.totalorder %s75, %s76
      %p85 = scmp.eq.s32.totalorder %s18, 0
      %p86 = por %p84, %p85
      %p87 = scmp.ne.s32.totalorder %s75, %s76
      %p88 = scmp.eq.s32.totalorder %s19, 1
      %p89 = por %p87, %p88
      %p91 = scmp.ne.s32.totalorder %s76, %s90
      %p92 = scmp.eq.s32.totalorder %s19, 0
      %p93 = por %p91, %p92
      %s95 = sadd.s32 %s94, 1
      %p98 = scmp.eq.s32.totalorder %s13, 1
      %p99 = scmp.ne.s32.totalorder %s94, %s96
      %p100 = scmp.eq.s32.totalorder %s13, 0
      %p101 = por %p99, %p100
      %p102 = scmp.ne.s32.totalorder %s94, %s96
      %p103 = scmp.eq.s32.totalorder %s18, 1
      %p104 = por %p102, %p103
      %p105 = scmp.ne.s32.totalorder %s96, %s97
      %p106 = scmp.eq.s32.totalorder %s18, 0
      %p107 = por %p105, %p106
      %p108 = scmp.ne.s32.totalorder %s96, %s97
      %p109 = scmp.eq.s32.totalorder %s19, 1
      %p110 = por %p108, %p109
      %p112 = scmp.ne.s32.totalorder %s97, %s111
      %p113 = scmp.eq.s32.totalorder %s19, 0
      %p114 = por %p112, %p113
      %s115 = ssub.s32 %s13, %s20
      %p116 = scmp.eq.s32.totalorder %s115, 0
      %s118 = sadd.s32 %s117, 1
      %s119 = scalar_select %p116, %s117, %s118
      %p122 = pneg %p116
      %p123 = scmp.eq.s32.totalorder %s13, 1
      %p124 = por %p122, %p123
      %p125 = scmp.ne.s32.totalorder %s117, %s120
      %p126 = scmp.eq.s32.totalorder %s13, 0
      %p127 = por %p125, %p126
      %p128 = scmp.ne.s32.totalorder %s117, %s120
      %p129 = scmp.eq.s32.totalorder %s18, 1
      %p130 = por %p128, %p129
      %p131 = scmp.ne.s32.totalorder %s120, %s121
      %p132 = scmp.eq.s32.totalorder %s18, 0
      %p133 = por %p131, %p132
      %p134 = scmp.ne.s32.totalorder %s120, %s121
      %p135 = scmp.eq.s32.totalorder %s19, 1
      %p136 = por %p134, %p135
      %p138 = scmp.ne.s32.totalorder %s121, %s137
      %p139 = scmp.eq.s32.totalorder %s19, 0
      %p140 = por %p138, %p139
      %p141 = scmp.le.s32.totalorder 1, %s13
      %p142 = scmp.lt.s32.totalorder %s13, 3
      %p143 = pnand %p141, %p142
      %p144 = pneg %p143
      // Predicated region
      $region9: #{tpu_custom_call.1} parent=5 // pred_check
        _
      $region10: #{tpu_custom_call.1} parent=5 // pred_check_branch
        %146 = sbr.rel (%p143) target = $region12
      $region11: #{tpu_custom_call.1} parent=5 // pred_region
        %s147 = ssub.s32 %s13, 1
        // Predicated region
        $region13: #{tpu_custom_call.1} parent=11 // pred_check
          %p148 = pneg %p86
        $region14: #{tpu_custom_call.1} parent=11 // pred_check_branch
          %150 = sbr.rel (%p148) target = $region16
        $region15: #{tpu_custom_call.1} parent=11 // pred_region
          _
        $region16: #{tpu_custom_call.1} parent=11 // pred_fallthru
          _
        // Predicated region
        $region17: #{tpu_custom_call.1} parent=11 // pred_check
          %p151 = pneg %p107
        $region18: #{tpu_custom_call.1} parent=11 // pred_check_branch
          %153 = sbr.rel (%p151) target = $region20
        $region19: #{tpu_custom_call.1} parent=11 // pred_region
          _
        $region20: #{tpu_custom_call.1} parent=11 // pred_fallthru
          _
      $region12: #{tpu_custom_call.1} parent=5 // pred_fallthru
        _
      %p154 = scmp.lt.s32.totalorder %s13, 2
      // Predicated region
      $region21: #{tpu_custom_call.1} parent=5 // pred_check
        %p155 = pneg %p154
      $region22: #{tpu_custom_call.1} parent=5 // pred_check_branch
        %157 = sbr.rel (%p155) target = $region24
      $region23: #{tpu_custom_call.1} parent=5 // pred_region
        // Predicated region
        $region25: #{tpu_custom_call.1} parent=23 // pred_check
          %p158 = pneg %p33
        $region26: #{tpu_custom_call.1} parent=23 // pred_check_branch
          %160 = sbr.rel (%p158) target = $region28
        $region27: #{tpu_custom_call.1} parent=23 // pred_region
          %p161 = scmp.lt.s32.totalorder %s13, 1
          %s162 = scalar_select %p161, %s13, 1
          %s163 = smul.addr %s162, 8
          %s164 = scalar_lea.vmem %s0, %s163
        $region28: #{tpu_custom_call.1} parent=23 // pred_fallthru
          _
        // Predicated region
        $region29: #{tpu_custom_call.1} parent=23 // pred_check
          %p165 = pneg %p59
        $region30: #{tpu_custom_call.1} parent=23 // pred_check_branch
          %167 = sbr.rel (%p165) target = $region32
        $region31: #{tpu_custom_call.1} parent=23 // pred_region
          %p168 = scmp.lt.s32.totalorder %s13, 1
          %s169 = scalar_select %p168, %s13, 1
          %s170 = smul.addr %s169, 8
          %s171 = scalar_lea.vmem %s1, %s170
        $region32: #{tpu_custom_call.1} parent=23 // pred_fallthru
          _
      $region24: #{tpu_custom_call.1} parent=5 // pred_fallthru
        _
      %p172 = scmp.le.s32.totalorder 1, %s13
      %p173 = scmp.lt.s32.totalorder %s13, 3
      %p174 = pnand %p172, %p173
      %p175 = pneg %p174
      // Predicated region
      $region33: #{tpu_custom_call.1} parent=5 // pred_check
        _
      $region34: #{tpu_custom_call.1} parent=5 // pred_check_branch
        %177 = sbr.rel (%p174) target = $region36
      $region35: #{tpu_custom_call.1} parent=5 // pred_region
        %s178 = ssub.s32 %s13, 1
        %p179 = scmp.lt.s32.totalorder %s18, 1
        %s180 = scalar_select %p179, %s18, 1
        %s181 = smul.addr %s180, 8
        %s182 = scalar_lea.vmem %s0, %s181
        %p183 = pneg %p39
        %p184 = pneg %p36
        %p185 = scmp.lt.s32.totalorder %s18, 1
        %s186 = scalar_select %p185, %s18, 1
        %s187 = smul.addr %s186, 8
        %s188 = scalar_lea.vmem %s1, %s187
        %p189 = pneg %p65
        %p190 = pneg %p62
        %p191 = pneg %p86
        %p192 = pneg %p83
        %p193 = pneg %p107
        %p194 = pneg %p104
        %p195 = pneg %p133
        %p196 = pneg %p130
        %s197 = sand.u32 %s120, 1
        %s198 = scalar_lea.sflag [#allocation3], %s197
        %s199 = sand.u32 %s120, 1
        %s200 = smul.addr %s199, 8
        %s201 = scalar_lea.vmem [#allocation2], %s200
        %p202 = scmp.lt.s32.totalorder %s18, 1
        %s203 = scalar_select %p202, %s18, 1
        %s204 = smul.addr %s203, 8
        %s205 = scalar_lea.vmem %s0, %s204
        %p206 = scmp.lt.s32.totalorder %s18, 1
        %s207 = scalar_select %p206, %s18, 1
        %s208 = smul.addr %s207, 8
        %s209 = scalar_lea.vmem %s1, %s208
        %v210 = vld [vmem:[%s205] sm:$0xff]
        %v211 = vld [vmem:[%s209] sm:$0xff]
        %v212 = vlaneseq
        %v213 = vand.u32 %v212, 127
        %214 = vset.pattern.permute.xlu0 0
        %215 = vperm.xlu0 %214, %v211
        %v216 = vpop.permute.xlu0 %215
        %vm217 = vcmp.eq.s32.totalorder %v211, %v216
        %v218 = vsel %vm217, 1, 0
        %vm219 = vcmp.gt.s32.totalorder %v213, 0
        %v220 = vsel %vm219, 1, 0
        %v221 = vmul.u32 %v218, %v220
        %222 = vset.pattern.permute.xlu0 1
        %223 = vperm.xlu0 %222, %v211
        %v224 = vpop.permute.xlu0 %223
        %vm225 = vcmp.eq.s32.totalorder %v211, %v224
        %v226 = vsel %vm225, 1, 0
        %vm227 = vcmp.gt.s32.totalorder %v213, 1
        %v228 = vsel %vm227, 1, 0
        %v229 = vmul.u32 %v226, %v228
        %v230 = vadd.s32 %v221, %v229
        %231 = vset.pattern.permute.xlu0 2
        %232 = vperm.xlu0 %231, %v211
        %v233 = vpop.permute.xlu0 %232
        %vm234 = vcmp.eq.s32.totalorder %v211, %v233
        %v235 = vsel %vm234, 1, 0
        %vm236 = vcmp.gt.s32.totalorder %v213, 2
        %v237 = vsel %vm236, 1, 0
        %v238 = vmul.u32 %v235, %v237
        %v239 = vadd.s32 %v230, %v238
        %240 = vset.pattern.permute.xlu0 3
        %241 = vperm.xlu0 %240, %v211
        %v242 = vpop.permute.xlu0 %241
        %vm243 = vcmp.eq.s32.totalorder %v211, %v242
        %v244 = vsel %vm243, 1, 0
        %vm245 = vcmp.gt.s32.totalorder %v213, 3
        %v246 = vsel %vm245, 1, 0
        %v247 = vmul.u32 %v244, %v246
        %v248 = vadd.s32 %v239, %v247
        %249 = vset.pattern.permute.xlu0 4
        %250 = vperm.xlu0 %249, %v211
        %v251 = vpop.permute.xlu0 %250
        %vm252 = vcmp.eq.s32.totalorder %v211, %v251
        %v253 = vsel %vm252, 1, 0
        %vm254 = vcmp.gt.s32.totalorder %v213, 4
        %v255 = vsel %vm254, 1, 0
        %v256 = vmul.u32 %v253, %v255
        %v257 = vadd.s32 %v248, %v256
        %258 = vset.pattern.permute.xlu0 5
        %259 = vperm.xlu0 %258, %v211
        %v260 = vpop.permute.xlu0 %259
        %vm261 = vcmp.eq.s32.totalorder %v211, %v260
        %v262 = vsel %vm261, 1, 0
        %vm263 = vcmp.gt.s32.totalorder %v213, 5
        %v264 = vsel %vm263, 1, 0
        %v265 = vmul.u32 %v262, %v264
        %v266 = vadd.s32 %v257, %v265
        %267 = vset.pattern.permute.xlu0 6
        %268 = vperm.xlu0 %267, %v211
        %v269 = vpop.permute.xlu0 %268
        %vm270 = vcmp.eq.s32.totalorder %v211, %v269
        %v271 = vsel %vm270, 1, 0
        %vm272 = vcmp.gt.s32.totalorder %v213, 6
        %v273 = vsel %vm272, 1, 0
        %v274 = vmul.u32 %v271, %v273
        %v275 = vadd.s32 %v266, %v274
        %276 = vset.pattern.permute.xlu0 7
        %277 = vperm.xlu0 %276, %v211
        %v278 = vpop.permute.xlu0 %277
        %vm279 = vcmp.eq.s32.totalorder %v211, %v278
        %v280 = vsel %vm279, 1, 0
        %vm281 = vcmp.gt.s32.totalorder %v213, 7
        %v282 = vsel %vm281, 1, 0
        %v283 = vmul.u32 %v280, %v282
        %v284 = vadd.s32 %v275, %v283
        %285 = vset.pattern.permute.xlu0 8
        %286 = vperm.xlu0 %285, %v211
        %v287 = vpop.permute.xlu0 %286
        %vm288 = vcmp.eq.s32.totalorder %v211, %v287
        %v289 = vsel %vm288, 1, 0
        %vm290 = vcmp.gt.s32.totalorder %v213, 8
        %v291 = vsel %vm290, 1, 0
        %v292 = vmul.u32 %v289, %v291
        %v293 = vadd.s32 %v284, %v292
        %294 = vset.pattern.permute.xlu0 9
        %295 = vperm.xlu0 %294, %v211
        %v296 = vpop.permute.xlu0 %295
        %vm297 = vcmp.eq.s32.totalorder %v211, %v296
        %v298 = vsel %vm297, 1, 0
        %vm299 = vcmp.gt.s32.totalorder %v213, 9
        %v300 = vsel %vm299, 1, 0
        %v301 = vmul.u32 %v298, %v300
        %v302 = vadd.s32 %v293, %v301
        %303 = vset.pattern.permute.xlu0 10
        %304 = vperm.xlu0 %303, %v211
        %v305 = vpop.permute.xlu0 %304
        %vm306 = vcmp.eq.s32.totalorder %v211, %v305
        %v307 = vsel %vm306, 1, 0
        %vm308 = vcmp.gt.s32.totalorder %v213, 10
        %v309 = vsel %vm308, 1, 0
        %v310 = vmul.u32 %v307, %v309
        %v311 = vadd.s32 %v302, %v310
        %312 = vset.pattern.permute.xlu0 11
        %313 = vperm.xlu0 %312, %v211
        %v314 = vpop.permute.xlu0 %313
        %vm315 = vcmp.eq.s32.totalorder %v211, %v314
        %v316 = vsel %vm315, 1, 0
        %vm317 = vcmp.gt.s32.totalorder %v213, 11
        %v318 = vsel %vm317, 1, 0
        %v319 = vmul.u32 %v316, %v318
        %v320 = vadd.s32 %v311, %v319
        %321 = vset.pattern.permute.xlu0 12
        %322 = vperm.xlu0 %321, %v211
        %v323 = vpop.permute.xlu0 %322
        %vm324 = vcmp.eq.s32.totalorder %v211, %v323
        %v325 = vsel %vm324, 1, 0
        %vm326 = vcmp.gt.s32.totalorder %v213, 12
        %v327 = vsel %vm326, 1, 0
        %v328 = vmul.u32 %v325, %v327
        %v329 = vadd.s32 %v320, %v328
        %330 = vset.pattern.permute.xlu0 13
        %331 = vperm.xlu0 %330, %v211
        %v332 = vpop.permute.xlu0 %331
        %vm333 = vcmp.eq.s32.totalorder %v211, %v332
        %v334 = vsel %vm333, 1, 0
        %vm335 = vcmp.gt.s32.totalorder %v213, 13
        %v336 = vsel %vm335, 1, 0
        %v337 = vmul.u32 %v334, %v336
        %v338 = vadd.s32 %v329, %v337
        %339 = vset.pattern.permute.xlu0 14
        %340 = vperm.xlu0 %339, %v211
        %v341 = vpop.permute.xlu0 %340
        %vm342 = vcmp.eq.s32.totalorder %v211, %v341
        %v343 = vsel %vm342, 1, 0
        %vm344 = vcmp.gt.s32.totalorder %v213, 14
        %v345 = vsel %vm344, 1, 0
        %v346 = vmul.u32 %v343, %v345
        %v347 = vadd.s32 %v338, %v346
        %348 = vset.pattern.permute.xlu0 15
        %349 = vperm.xlu0 %348, %v211
        %v350 = vpop.permute.xlu0 %349
        %vm351 = vcmp.eq.s32.totalorder %v211, %v350
        %v352 = vsel %vm351, 1, 0
        %vm353 = vcmp.gt.s32.totalorder %v213, 15
        %v354 = vsel %vm353, 1, 0
        %v355 = vmul.u32 %v352, %v354
        %v356 = vadd.s32 %v347, %v355
        %357 = vset.pattern.permute.xlu0 16
        %358 = vperm.xlu0 %357, %v211
        %v359 = vpop.permute.xlu0 %358
        %vm360 = vcmp.eq.s32.totalorder %v211, %v359
        %v361 = vsel %vm360, 1, 0
        %vm362 = vcmp.gt.s32.totalorder %v213, 16
        %v363 = vsel %vm362, 1, 0
        %v364 = vmul.u32 %v361, %v363
        %v365 = vadd.s32 %v356, %v364
        %366 = vset.pattern.permute.xlu0 17
        %367 = vperm.xlu0 %366, %v211
        %v368 = vpop.permute.xlu0 %367
        %vm369 = vcmp.eq.s32.totalorder %v211, %v368
        %v370 = vsel %vm369, 1, 0
        %vm371 = vcmp.gt.s32.totalorder %v213, 17
        %v372 = vsel %vm371, 1, 0
        %v373 = vmul.u32 %v370, %v372
        %v374 = vadd.s32 %v365, %v373
        %375 = vset.pattern.permute.xlu0 18
        %376 = vperm.xlu0 %375, %v211
        %v377 = vpop.permute.xlu0 %376
        %vm378 = vcmp.eq.s32.totalorder %v211, %v377
        %v379 = vsel %vm378, 1, 0
        %vm380 = vcmp.gt.s32.totalorder %v213, 18
        %v381 = vsel %vm380, 1, 0
        %v382 = vmul.u32 %v379, %v381
        %v383 = vadd.s32 %v374, %v382
        %384 = vset.pattern.permute.xlu0 19
        %385 = vperm.xlu0 %384, %v211
        %v386 = vpop.permute.xlu0 %385
        %vm387 = vcmp.eq.s32.totalorder %v211, %v386
        %v388 = vsel %vm387, 1, 0
        %vm389 = vcmp.gt.s32.totalorder %v213, 19
        %v390 = vsel %vm389, 1, 0
        %v391 = vmul.u32 %v388, %v390
        %v392 = vadd.s32 %v383, %v391
        %393 = vset.pattern.permute.xlu0 20
        %394 = vperm.xlu0 %393, %v211
        %v395 = vpop.permute.xlu0 %394
        %vm396 = vcmp.eq.s32.totalorder %v211, %v395
        %v397 = vsel %vm396, 1, 0
        %vm398 = vcmp.gt.s32.totalorder %v213, 20
        %v399 = vsel %vm398, 1, 0
        %v400 = vmul.u32 %v397, %v399
        %v401 = vadd.s32 %v392, %v400
        %402 = vset.pattern.permute.xlu0 21
        %403 = vperm.xlu0 %402, %v211
        %v404 = vpop.permute.xlu0 %403
        %vm405 = vcmp.eq.s32.totalorder %v211, %v404
        %v406 = vsel %vm405, 1, 0
        %vm407 = vcmp.gt.s32.totalorder %v213, 21
        %v408 = vsel %vm407, 1, 0
        %v409 = vmul.u32 %v406, %v408
        %v410 = vadd.s32 %v401, %v409
        %411 = vset.pattern.permute.xlu0 22
        %412 = vperm.xlu0 %411, %v211
        %v413 = vpop.permute.xlu0 %412
        %vm414 = vcmp.eq.s32.totalorder %v211, %v413
        %v415 = vsel %vm414, 1, 0
        %vm416 = vcmp.gt.s32.totalorder %v213, 22
        %v417 = vsel %vm416, 1, 0
        %v418 = vmul.u32 %v415, %v417
        %v419 = vadd.s32 %v410, %v418
        %420 = vset.pattern.permute.xlu0 23
        %421 = vperm.xlu0 %420, %v211
        %v422 = vpop.permute.xlu0 %421
        %vm423 = vcmp.eq.s32.totalorder %v211, %v422
        %v424 = vsel %vm423, 1, 0
        %vm425 = vcmp.gt.s32.totalorder %v213, 23
        %v426 = vsel %vm425, 1, 0
        %v427 = vmul.u32 %v424, %v426
        %v428 = vadd.s32 %v419, %v427
        %429 = vset.pattern.permute.xlu0 24
        %430 = vperm.xlu0 %429, %v211
        %v431 = vpop.permute.xlu0 %430
        %vm432 = vcmp.eq.s32.totalorder %v211, %v431
        %v433 = vsel %vm432, 1, 0
        %vm434 = vcmp.gt.s32.totalorder %v213, 24
        %v435 = vsel %vm434, 1, 0
        %v436 = vmul.u32 %v433, %v435
        %v437 = vadd.s32 %v428, %v436
        %438 = vset.pattern.permute.xlu0 25
        %439 = vperm.xlu0 %438, %v211
        %v440 = vpop.permute.xlu0 %439
        %vm441 = vcmp.eq.s32.totalorder %v211, %v440
        %v442 = vsel %vm441, 1, 0
        %vm443 = vcmp.gt.s32.totalorder %v213, 25
        %v444 = vsel %vm443, 1, 0
        %v445 = vmul.u32 %v442, %v444
        %v446 = vadd.s32 %v437, %v445
        %447 = vset.pattern.permute.xlu0 26
        %448 = vperm.xlu0 %447, %v211
        %v449 = vpop.permute.xlu0 %448
        %vm450 = vcmp.eq.s32.totalorder %v211, %v449
        %v451 = vsel %vm450, 1, 0
        %vm452 = vcmp.gt.s32.totalorder %v213, 26
        %v453 = vsel %vm452, 1, 0
        %v454 = vmul.u32 %v451, %v453
        %v455 = vadd.s32 %v446, %v454
        %456 = vset.pattern.permute.xlu0 27
        %457 = vperm.xlu0 %456, %v211
        %v458 = vpop.permute.xlu0 %457
        %vm459 = vcmp.eq.s32.totalorder %v211, %v458
        %v460 = vsel %vm459, 1, 0
        %vm461 = vcmp.gt.s32.totalorder %v213, 27
        %v462 = vsel %vm461, 1, 0
        %v463 = vmul.u32 %v460, %v462
        %v464 = vadd.s32 %v455, %v463
        %465 = vset.pattern.permute.xlu0 28
        %466 = vperm.xlu0 %465, %v211
        %v467 = vpop.permute.xlu0 %466
        %vm468 = vcmp.eq.s32.totalorder %v211, %v467
        %v469 = vsel %vm468, 1, 0
        %vm470 = vcmp.gt.s32.totalorder %v213, 28
        %v471 = vsel %vm470, 1, 0
        %v472 = vmul.u32 %v469, %v471
        %v473 = vadd.s32 %v464, %v472
        %474 = vset.pattern.permute.xlu0 29
        %475 = vperm.xlu0 %474, %v211
        %v476 = vpop.permute.xlu0 %475
        %vm477 = vcmp.eq.s32.totalorder %v211, %v476
        %v478 = vsel %vm477, 1, 0
        %vm479 = vcmp.gt.s32.totalorder %v213, 29
        %v480 = vsel %vm479, 1, 0
        %v481 = vmul.u32 %v478, %v480
        %v482 = vadd.s32 %v473, %v481
        %483 = vset.pattern.permute.xlu0 30
        %484 = vperm.xlu0 %483, %v211
        %v485 = vpop.permute.xlu0 %484
        %vm486 = vcmp.eq.s32.totalorder %v211, %v485
        %v487 = vsel %vm486, 1, 0
        %vm488 = vcmp.gt.s32.totalorder %v213, 30
        %v489 = vsel %vm488, 1, 0
        %v490 = vmul.u32 %v487, %v489
        %v491 = vadd.s32 %v482, %v490
        %vm492 = vcmp.eq.s32.totalorder %v491, 0
        %vm493 = vcmp.ne.s32.totalorder %v211, 0
        %vm494 = vmand %vm492, %vm493
        %v495 = vsel %vm494, 1.0, 0.0
        %v496 = vld [vmem:[%s2] sm:$0xff]
        %v497 = vld [vmem:[%s2 + $0x8] sm:$0xff]
        %v498 = vld [vmem:[%s2 + $0x10] sm:$0xff]
        %v499 = vld [vmem:[%s2 + $0x18] sm:$0xff]
        %v500 = vld [vmem:[%s2 + $0x20] sm:$0xff]
        %v501 = vld [vmem:[%s2 + $0x28] sm:$0xff]
        %v502 = vld [vmem:[%s2 + $0x30] sm:$0xff]
        %v503 = vld [vmem:[%s2 + $0x38] sm:$0xff]
        %v504 = vld [vmem:[%s2 + $0x40] sm:$0xff]
        %v505 = vld [vmem:[%s2 + $0x48] sm:$0xff]
        %v506 = vld [vmem:[%s2 + $0x50] sm:$0xff]
        %v507 = vld [vmem:[%s2 + $0x58] sm:$0xff]
        %v508 = vld [vmem:[%s2 + $0x60] sm:$0xff]
        %v509 = vld [vmem:[%s2 + $0x68] sm:$0xff]
        %v510 = vld [vmem:[%s2 + $0x70] sm:$0xff]
        %v511 = vld [vmem:[%s2 + $0x78] sm:$0xff]
        %v512 = vld [vmem:[%s2 + $0x80] sm:$0xff]
        %v513 = vld [vmem:[%s2 + $0x88] sm:$0xff]
        %v514 = vld [vmem:[%s2 + $0x90] sm:$0xff]
        %v515 = vld [vmem:[%s2 + $0x98] sm:$0xff]
        %v516 = vld [vmem:[%s2 + $0xa0] sm:$0xff]
        %v517 = vld [vmem:[%s2 + $0xa8] sm:$0xff]
        %v518 = vld [vmem:[%s2 + $0xb0] sm:$0xff]
        %v519 = vld [vmem:[%s2 + $0xb8] sm:$0xff]
        %v520 = vld [vmem:[%s2 + $0xc0] sm:$0xff]
        %v521 = vld [vmem:[%s2 + $0xc8] sm:$0xff]
        %v522 = vld [vmem:[%s2 + $0xd0] sm:$0xff]
        %v523 = vld [vmem:[%s2 + $0xd8] sm:$0xff]
        %v524 = vld [vmem:[%s2 + $0xe0] sm:$0xff]
        %v525 = vld [vmem:[%s2 + $0xe8] sm:$0xff]
        %v526 = vld [vmem:[%s2 + $0xf0] sm:$0xff]
        %v527 = vld [vmem:[%s2 + $0xf8] sm:$0xff]
        %528 = vmatprep.subr.mxu0 %v497
        %529 = vmatpush1.msra.mxu0 %v496
        %530 = vmatprep.subr.mxu0 %v499
        %531 = vmatpush1.msra.mxu0 %v498
        %532 = vmatprep.subr.mxu0 %v501
        %533 = vmatpush1.msra.mxu0 %v500
        %534 = vmatprep.subr.mxu0 %v503
        %535 = vmatpush1.msra.mxu0 %v502
        %536 = vmatprep.subr.mxu0 %v505
        %537 = vmatpush1.msra.mxu0 %v504
        %538 = vmatprep.subr.mxu0 %v507
        %539 = vmatpush1.msra.mxu0 %v506
        %540 = vmatprep.subr.mxu0 %v509
        %541 = vmatpush1.msra.mxu0 %v508
        %542 = vmatprep.subr.mxu0 %v511
        %543 = vmatpush1.msra.mxu0 %v510
        %544 = vmatprep.subr.mxu0 %v513
        %545 = vmatpush1.msra.mxu0 %v512
        %546 = vmatprep.subr.mxu0 %v515
        %547 = vmatpush1.msra.mxu0 %v514
        %548 = vmatprep.subr.mxu0 %v517
        %549 = vmatpush1.msra.mxu0 %v516
        %550 = vmatprep.subr.mxu0 %v519
        %551 = vmatpush1.msra.mxu0 %v518
        %552 = vmatprep.subr.mxu0 %v521
        %553 = vmatpush1.msra.mxu0 %v520
        %554 = vmatprep.subr.mxu0 %v523
        %555 = vmatpush1.msra.mxu0 %v522
        %556 = vmatprep.subr.mxu0 %v525
        %557 = vmatpush1.msra.mxu0 %v524
        %558 = vmatprep.subr.mxu0 %v527
        %559 = vmatpush1.msra.mxu0 %v526
        %560 = vmatprep.subr.mxu0 0.0
        %561 = vmatpush1.msra.mxu0 0.0
        %562 = vmatprep.subr.mxu0 0.0
        %563 = vmatpush1.msra.mxu0 0.0
        %564 = vmatprep.subr.mxu0 0.0
        %565 = vmatpush1.msra.mxu0 0.0
        %566 = vmatprep.subr.mxu0 0.0
        %567 = vmatpush1.msra.mxu0 0.0
        %568 = vmatprep.subr.mxu0 0.0
        %569 = vmatpush1.msra.mxu0 0.0
        %570 = vmatprep.subr.mxu0 0.0
        %571 = vmatpush1.msra.mxu0 0.0
        %572 = vmatprep.subr.mxu0 0.0
        %573 = vmatpush1.msra.mxu0 0.0
        %574 = vmatprep.subr.mxu0 0.0
        %575 = vmatpush1.msra.mxu0 0.0
        %576 = vmatprep.subr.mxu0 0.0
        %577 = vmatpush1.msra.mxu0 0.0
        %578 = vmatprep.subr.mxu0 0.0
        %579 = vmatpush1.msra.mxu0 0.0
        %580 = vmatprep.subr.mxu0 0.0
        %581 = vmatpush1.msra.mxu0 0.0
        %582 = vmatprep.subr.mxu0 0.0
        %583 = vmatpush1.msra.mxu0 0.0
        %584 = vmatprep.subr.mxu0 0.0
        %585 = vmatpush1.msra.mxu0 0.0
        %586 = vmatprep.subr.mxu0 0.0
        %587 = vmatpush1.msra.mxu0 0.0
        %588 = vmatprep.subr.mxu0 0.0
        %589 = vmatpush1.msra.mxu0 0.0
        %590 = vmatprep.subr.mxu0 0.0
        %591 = vmatpush1.msra.mxu0 0.0
        %592 = vmatprep.mubr.f32.mxu0 0.0
        %593 = vmatmul.mubr.f32.gmra.mrb[0].mxu0 %v210
        %v594 = vpop.f32.mrb[0].mxu0
        %v595 = vadd.f32 0.0, %v594
        %v596 = vpop.f32.mrb[0].mxu0
        %v597 = vadd.f32 0.0, %v596
        %598 = vdwg.mxu0
        %v599 = vld [vmem:[%s3 + $0x80] sm:$0xff]
        %v600 = vld [vmem:[%s3 + $0x88] sm:$0xff]
        %v601 = vld [vmem:[%s3 + $0x90] sm:$0xff]
        %v602 = vld [vmem:[%s3 + $0x98] sm:$0xff]
        %vm603 = vcmask 261120
        %v605 = vsel %vm603, %v495, 0
        %607 = vmatprep.subr.mxu0 0.0
        %608 = vmatpush1.msra.mxu0 %v599
        %609 = vmatprep.subr.mxu0 0.0
        %610 = vmatpush1.msra.mxu0 %v600
        %611 = vmatprep.subr.mxu0 0.0
        %612 = vmatpush1.msra.mxu0 %v601
        %613 = vmatprep.subr.mxu0 0.0
        %614 = vmatpush1.msra.mxu0 %v602
        %615 = vmatprep.subr.mxu0 0.0
        %616 = vmatpush1.msra.mxu0 0.0
        %617 = vmatprep.subr.mxu0 0.0
        %618 = vmatpush1.msra.mxu0 0.0
        %619 = vmatprep.subr.mxu0 0.0
        %620 = vmatpush1.msra.mxu0 0.0
        %621 = vmatprep.subr.mxu0 0.0
        %622 = vmatpush1.msra.mxu0 0.0
        %623 = vmatprep.subr.mxu0 0.0
        %624 = vmatpush1.msra.mxu0 0.0
        %625 = vmatprep.subr.mxu0 0.0
        %626 = vmatpush1.msra.mxu0 0.0
        %627 = vmatprep.subr.mxu0 0.0
        %628 = vmatpush1.msra.mxu0 0.0
        %629 = vmatprep.subr.mxu0 0.0
        %630 = vmatpush1.msra.mxu0 0.0
        %631 = vmatprep.subr.mxu0 0.0
        %632 = vmatpush1.msra.mxu0 0.0
        %633 = vmatprep.subr.mxu0 0.0
        %634 = vmatpush1.msra.mxu0 0.0
        %635 = vmatprep.subr.mxu0 0.0
        %636 = vmatpush1.msra.mxu0 0.0
        %637 = vmatprep.subr.mxu0 0.0
        %638 = vmatpush1.msra.mxu0 0.0
        %639 = vmatprep.subr.mxu0 0.0
        %640 = vmatpush1.msra.mxu0 0.0
        %641 = vmatprep.subr.mxu0 0.0
        %642 = vmatpush1.msra.mxu0 0.0
        %643 = vmatprep.subr.mxu0 0.0
        %644 = vmatpush1.msra.mxu0 0.0
        %645 = vmatprep.subr.mxu0 0.0
        %646 = vmatpush1.msra.mxu0 0.0
        %647 = vmatprep.subr.mxu0 0.0
        %648 = vmatpush1.msra.mxu0 0.0
        %649 = vmatprep.subr.mxu0 0.0
        %650 = vmatpush1.msra.mxu0 0.0
        %651 = vmatprep.subr.mxu0 0.0
        %652 = vmatpush1.msra.mxu0 0.0
        %653 = vmatprep.subr.mxu0 0.0
        %654 = vmatpush1.msra.mxu0 0.0
        %655 = vmatprep.subr.mxu0 0.0
        %656 = vmatpush1.msra.mxu0 0.0
        %657 = vmatprep.subr.mxu0 0.0
        %658 = vmatpush1.msra.mxu0 0.0
        %659 = vmatprep.subr.mxu0 0.0
        %660 = vmatpush1.msra.mxu0 0.0
        %661 = vmatprep.subr.mxu0 0.0
        %662 = vmatpush1.msra.mxu0 0.0
        %663 = vmatprep.subr.mxu0 0.0
        %664 = vmatpush1.msra.mxu0 0.0
        %665 = vmatprep.subr.mxu0 0.0
        %666 = vmatpush1.msra.mxu0 0.0
        %667 = vmatprep.subr.mxu0 0.0
        %668 = vmatpush1.msra.mxu0 0.0
        %669 = vmatprep.subr.mxu0 0.0
        %670 = vmatpush1.msra.mxu0 0.0
        %671 = vmatprep.mubr.f32.mxu0 0.0
        %672 = vmatmul.mubr.f32.gmra.mrb[0].mxu0 %v605
        %v673 = vpop.f32.mrb[0].mxu0
        %v674 = vadd.f32 0.0, %v673
        %v675 = vpop.f32.mrb[0].mxu0
        %676 = vdwg.mxu0
        %v677 = vtanh.pop %v595
        %v678 = vadd.f32 %v597, %v674
        %v679 = vtanh.pop %v678
        %v680 = vld [vmem:[%s3] sm:$0xff]
        %v681 = vld [vmem:[%s3 + $0x8] sm:$0xff]
        %v682 = vld [vmem:[%s3 + $0x10] sm:$0xff]
        %v683 = vld [vmem:[%s3 + $0x18] sm:$0xff]
        %v684 = vld [vmem:[%s3 + $0x20] sm:$0xff]
        %v685 = vld [vmem:[%s3 + $0x28] sm:$0xff]
        %v686 = vld [vmem:[%s3 + $0x30] sm:$0xff]
        %v687 = vld [vmem:[%s3 + $0x38] sm:$0xff]
        %v688 = vld [vmem:[%s3 + $0x40] sm:$0xff]
        %v689 = vld [vmem:[%s3 + $0x48] sm:$0xff]
        %v690 = vld [vmem:[%s3 + $0x50] sm:$0xff]
        %v691 = vld [vmem:[%s3 + $0x58] sm:$0xff]
        %v692 = vld [vmem:[%s3 + $0x60] sm:$0xff]
        %v693 = vld [vmem:[%s3 + $0x68] sm:$0xff]
        %v694 = vld [vmem:[%s3 + $0x70] sm:$0xff]
        %v695 = vld [vmem:[%s3 + $0x78] sm:$0xff]
        %v696 = vld [vmem:[%s3 + $0xa0] sm:$0x1]
        %v697 = vlaneseq
        %v698 = vshrl.u32 %v697, 7
        %v699 = vsub.s32 0, %v698
        %v700 = vrot.slane %v696, %v699
        %701 = vmatprep.subr.mxu0 0.0
        %702 = vmatpush1.msra.mxu0 %v680
        %703 = vmatprep.subr.mxu0 0.0
        %704 = vmatpush1.msra.mxu0 %v681
        %705 = vmatprep.subr.mxu0 0.0
        %706 = vmatpush1.msra.mxu0 %v682
        %707 = vmatprep.subr.mxu0 0.0
        %708 = vmatpush1.msra.mxu0 %v683
        %709 = vmatprep.subr.mxu0 0.0
        %710 = vmatpush1.msra.mxu0 %v684
        %711 = vmatprep.subr.mxu0 0.0
        %712 = vmatpush1.msra.mxu0 %v685
        %713 = vmatprep.subr.mxu0 0.0
        %714 = vmatpush1.msra.mxu0 %v686
        %715 = vmatprep.subr.mxu0 0.0
        %716 = vmatpush1.msra.mxu0 %v687
        %717 = vmatprep.subr.mxu0 0.0
        %718 = vmatpush1.msra.mxu0 %v688
        %719 = vmatprep.subr.mxu0 0.0
        %720 = vmatpush1.msra.mxu0 %v689
        %721 = vmatprep.subr.mxu0 0.0
        %722 = vmatpush1.msra.mxu0 %v690
        %723 = vmatprep.subr.mxu0 0.0
        %724 = vmatpush1.msra.mxu0 %v691
        %725 = vmatprep.subr.mxu0 0.0
        %726 = vmatpush1.msra.mxu0 %v692
        %727 = vmatprep.subr.mxu0 0.0
        %728 = vmatpush1.msra.mxu0 %v693
        %729 = vmatprep.subr.mxu0 0.0
        %730 = vmatpush1.msra.mxu0 %v694
        %731 = vmatprep.subr.mxu0 0.0
        %732 = vmatpush1.msra.mxu0 %v695
        %733 = vmatprep.subr.mxu0 0.0
        %734 = vmatpush1.msra.mxu0 0.0
        %735 = vmatprep.subr.mxu0 0.0
        %736 = vmatpush1.msra.mxu0 0.0
        %737 = vmatprep.subr.mxu0 0.0
        %738 = vmatpush1.msra.mxu0 0.0
        %739 = vmatprep.subr.mxu0 0.0
        %740 = vmatpush1.msra.mxu0 0.0
        %741 = vmatprep.subr.mxu0 0.0
        %742 = vmatpush1.msra.mxu0 0.0
        %743 = vmatprep.subr.mxu0 0.0
        %744 = vmatpush1.msra.mxu0 0.0
        %745 = vmatprep.subr.mxu0 0.0
        %746 = vmatpush1.msra.mxu0 0.0
        %747 = vmatprep.subr.mxu0 0.0
        %748 = vmatpush1.msra.mxu0 0.0
        %749 = vmatprep.subr.mxu0 0.0
        %750 = vmatpush1.msra.mxu0 0.0
        %751 = vmatprep.subr.mxu0 0.0
        %752 = vmatpush1.msra.mxu0 0.0
        %753 = vmatprep.subr.mxu0 0.0
        %754 = vmatpush1.msra.mxu0 0.0
        %755 = vmatprep.subr.mxu0 0.0
        %756 = vmatpush1.msra.mxu0 0.0
        %757 = vmatprep.subr.mxu0 0.0
        %758 = vmatpush1.msra.mxu0 0.0
        %759 = vmatprep.subr.mxu0 0.0
        %760 = vmatpush1.msra.mxu0 0.0
        %761 = vmatprep.subr.mxu0 0.0
        %762 = vmatpush1.msra.mxu0 0.0
        %763 = vmatprep.subr.mxu0 0.0
        %764 = vmatpush1.msra.mxu0 0.0
        %765 = vmatprep.mubr.f32.mxu0 0.0
        %766 = vmatmul.mubr.f32.gmra.mrb[0].mxu0 %v677
        %v767 = vpop.f32.mrb[0].mxu0
        %v768 = vadd.f32 %v700, %v767
        %v769 = vpop.f32.mrb[0].mxu0
        %770 = vdwg.mxu0
        %v771 = vld [vmem:[%s3 + $0xa8] sm:$0xff]
        %v772 = vld [vmem:[%s3 + $0xb0] sm:$0xff]
        %v773 = vld [vmem:[%s3 + $0xb8] sm:$0xff]
        %v774 = vld [vmem:[%s3 + $0xc0] sm:$0xff]
        %v775 = vld [vmem:[%s3 + $0xc8] sm:$0x1]
        %v776 = vlaneseq
        %v777 = vshrl.u32 %v776, 7
        %v778 = vsub.s32 0, %v777
        %v779 = vrot.slane %v775, %v778
        %v781 = vsel %vm603, %v679, 0
        %783 = vmatprep.subr.mxu0 0.0
        %784 = vmatpush1.msra.mxu0 %v771
        %785 = vmatprep.subr.mxu0 0.0
        %786 = vmatpush1.msra.mxu0 %v772
        %787 = vmatprep.subr.mxu0 0.0
        %788 = vmatpush1.msra.mxu0 %v773
        %789 = vmatprep.subr.mxu0 0.0
        %790 = vmatpush1.msra.mxu0 %v774
        %791 = vmatprep.subr.mxu0 0.0
        %792 = vmatpush1.msra.mxu0 0.0
        %793 = vmatprep.subr.mxu0 0.0
        %794 = vmatpush1.msra.mxu0 0.0
        %795 = vmatprep.subr.mxu0 0.0
        %796 = vmatpush1.msra.mxu0 0.0
        %797 = vmatprep.subr.mxu0 0.0
        %798 = vmatpush1.msra.mxu0 0.0
        %799 = vmatprep.subr.mxu0 0.0
        %800 = vmatpush1.msra.mxu0 0.0
        %801 = vmatprep.subr.mxu0 0.0
        %802 = vmatpush1.msra.mxu0 0.0
        %803 = vmatprep.subr.mxu0 0.0
        %804 = vmatpush1.msra.mxu0 0.0
        %805 = vmatprep.subr.mxu0 0.0
        %806 = vmatpush1.msra.mxu0 0.0
        %807 = vmatprep.subr.mxu0 0.0
        %808 = vmatpush1.msra.mxu0 0.0
        %809 = vmatprep.subr.mxu0 0.0
        %810 = vmatpush1.msra.mxu0 0.0
        %811 = vmatprep.subr.mxu0 0.0
        %812 = vmatpush1.msra.mxu0 0.0
        %813 = vmatprep.subr.mxu0 0.0
        %814 = vmatpush1.msra.mxu0 0.0
        %815 = vmatprep.subr.mxu0 0.0
        %816 = vmatpush1.msra.mxu0 0.0
        %817 = vmatprep.subr.mxu0 0.0
        %818 = vmatpush1.msra.mxu0 0.0
        %819 = vmatprep.subr.mxu0 0.0
        %820 = vmatpush1.msra.mxu0 0.0
        %821 = vmatprep.subr.mxu0 0.0
        %822 = vmatpush1.msra.mxu0 0.0
        %823 = vmatprep.subr.mxu0 0.0
        %824 = vmatpush1.msra.mxu0 0.0
        %825 = vmatprep.subr.mxu0 0.0
        %826 = vmatpush1.msra.mxu0 0.0
        %827 = vmatprep.subr.mxu0 0.0
        %828 = vmatpush1.msra.mxu0 0.0
        %829 = vmatprep.subr.mxu0 0.0
        %830 = vmatpush1.msra.mxu0 0.0
        %831 = vmatprep.subr.mxu0 0.0
        %832 = vmatpush1.msra.mxu0 0.0
        %833 = vmatprep.subr.mxu0 0.0
        %834 = vmatpush1.msra.mxu0 0.0
        %835 = vmatprep.subr.mxu0 0.0
        %836 = vmatpush1.msra.mxu0 0.0
        %837 = vmatprep.subr.mxu0 0.0
        %838 = vmatpush1.msra.mxu0 0.0
        %839 = vmatprep.subr.mxu0 0.0
        %840 = vmatpush1.msra.mxu0 0.0
        %841 = vmatprep.subr.mxu0 0.0
        %842 = vmatpush1.msra.mxu0 0.0
        %843 = vmatprep.subr.mxu0 0.0
        %844 = vmatpush1.msra.mxu0 0.0
        %845 = vmatprep.subr.mxu0 0.0
        %846 = vmatpush1.msra.mxu0 0.0
        %847 = vmatprep.mubr.f32.mxu0 0.0
        %848 = vmatmul.mubr.f32.gmra.mrb[0].mxu0 %v781
        %v849 = vpop.f32.mrb[0].mxu0
        %v850 = vadd.f32 %v779, %v849
        %v851 = vpop.f32.mrb[0].mxu0
        %852 = vdwg.mxu0
        %854 = vrot.lane.b32.xlu0 %v597, 96
        %v855 = vpop.permute.xlu0 %854
        %v857 = vsub.f32 %v850, %v855
        %v858 = vxor.u32 %v857, 2147483648
        %v859 = vmul.f32 %v858, 1.442695
        %v860 = vpow.pop %v859
        %v861 = vadd.f32 %v860, 1.0
        %v862 = vrcp.pop %v861
        %v863 = vmul.f32 1.0, %v862
        %v864 = vxor.u32 %v850, 2147483648
        %v865 = vmul.f32 %v864, 1.442695
        %v866 = vpow.pop %v865
        %v867 = vadd.f32 %v866, 1.0
        %v868 = vrcp.pop %v867
        %v869 = vmul.f32 1.0, %v868
        %871 = vset.pattern.permute.xlu0 1
        %872 = vperm.xlu0 %871, %v869
        %v873 = vpop.permute.xlu0 %872
        %v875 = vmul.f32 %v210, %v873
        %v876 = vsub.f32 %v768, %v875
        %v877 = vsel %vm603, %v876, -inf
        %878 = vmax.xlane.f32.xlu0 %v877
        %v879 = vpop.xlane.xlu0 %878
        %v880 = vsub.f32 %v876, %v879
        %v881 = vmul.f32 %v880, 1.442695
        %v882 = vpow.pop %v881
        %v883 = vsel %vm603, %v882, 0.0
        %884 = vadd.xlane.f32.xlu0 %v883
        %v885 = vpop.xlane.xlu0 %884
        %v886 = vrcp.pop %v885
        %v887 = vmul.f32 %v882, %v886
        %888 = vst.msk [vmem:[%s201] sm:$0xff] %vm603, %v887
        %890 = vrot.lane.b32.xlu0 %v768, 32
        %v891 = vpop.permute.xlu0 %890
        %vm893 = vcmask 523520
        %894 = vst.msk [vmem:[%s201] sm:$0xff] %vm893, %v891
        %895 = vrot.lane.b32.xlu0 %v869, 63
        %v896 = vpop.permute.xlu0 %895
        %vm898 = vcmask 531968
        %899 = vst.msk [vmem:[%s201] sm:$0xff] %vm898, %v896
        %901 = vrot.lane.b32.xlu0 %v863, 65
        %v902 = vpop.permute.xlu0 %901
        %vm904 = vcmask 540168
        %905 = vst.msk [vmem:[%s201] sm:$0xff] %vm904, %v902
        %vm906 = vcmask 1048080
        %907 = vst.msk [vmem:[%s201] sm:$0xff] %vm906, 0.0
        %s908 = sand.u32 %s120, 1
        %s909 = scalar_lea.sflag [#allocation3], %s908
        %s910 = sand.u32 %s120, 1
        %s911 = smul.addr %s910, 8
        %s912 = scalar_lea.vmem [#allocation2], %s911
        // Predicated region
        $region37: #{tpu_custom_call.1} parent=35 // pred_check
          %p913 = pneg %p130
        $region38: #{tpu_custom_call.1} parent=35 // pred_check_branch
          %915 = sbr.rel (%p913) target = $region40
        $region39: #{tpu_custom_call.1} parent=35 // pred_region
          %s917 = ssub.s32 128, 128
          %918 = vsyncadd %s909, %s917
          %s919 = smul.addr %s18, 128
          %s920 = scalar_lea.hbm %s4, %s919
          %s922 = sshll.u32 %s912, 4
          %s923 = int_to_ptr.vmem [resolvable:$true] %s922
          %925 = dma.vmem_to_hbm [thread:$0]  %s923, 128, %s920, %s909
        $region40: #{tpu_custom_call.1} parent=35 // pred_fallthru
          _
      $region36: #{tpu_custom_call.1} parent=5 // pred_fallthru
        _
      %p926 = scmp.le.s32.totalorder 2, %s13
      // Predicated region
      $region41: #{tpu_custom_call.1} parent=5 // pred_check
        %p927 = pneg %p926
      $region42: #{tpu_custom_call.1} parent=5 // pred_check_branch
        %929 = sbr.rel (%p927) target = $region44
      $region43: #{tpu_custom_call.1} parent=5 // pred_region
        %s930 = ssub.s32 %s13, 2
        // Predicated region
        $region45: #{tpu_custom_call.1} parent=43 // pred_check
          %p931 = pneg %p136
        $region46: #{tpu_custom_call.1} parent=43 // pred_check_branch
          %933 = sbr.rel (%p931) target = $region48
        $region47: #{tpu_custom_call.1} parent=43 // pred_region
          %s934 = sand.u32 %s121, 1
          %s935 = scalar_lea.sflag [#allocation3], %s934
          %s936 = sand.u32 %s121, 1
          %s937 = smul.addr %s936, 8
          %s938 = scalar_lea.vmem [#allocation2], %s937
          %939 = dma.done %s935, 128
        $region48: #{tpu_custom_call.1} parent=43 // pred_fallthru
          _
      $region44: #{tpu_custom_call.1} parent=5 // pred_fallthru
        _
    $region6: #{tpu_custom_call.1} parent=1 // loop_footer
      %s17 = sadd.s32 1, %s13
    $region7: #{tpu_custom_call.1} parent=1 // loop_footer_branch
      %12 = sbr.rel target = $region3
    $region8: #{tpu_custom_call.1} parent=1 // loop_exit
      _
    %940 = vsyncpa [#allocation3], 1
    %s941 = scalar_lea.sflag [#allocation3], 1
    %942 = vsyncpa %s941, 1

</llo_original>
